<compile_context>
chip_gen: v6e
topology: v6e:2x2x1
jax: 0.10.0
libtpu: 0.0.40
codegen_flags: <defaults>
</compile_context>

<pallas_src>
import functools
from math import floor

import jax
import jax.numpy as jnp
import numpy as np
from jax import lax
from jax.experimental import pallas as pl
from jax.experimental.pallas import tpu as pltpu

# --- module hyper-parameters (the PyTorch file leaves these as globals; pick small) ---
SLICE_SIZE = 8          # conv out_channels == pool kernel == sequence length
LT_DAYS = 16            # long-term  conv in_channels
MT_DAYS = 8             # medium-term conv in_channels
CONV_K = 3              # CONV_KERNEL_SIZE (stride=1, pad=1, dilation=1, groups=1)
CONV_PAD = 1

S = SLICE_SIZE
F_LT = LT_DAYS * S                 # 128  flattened long-term features per sample
F_MT = MT_DAYS * S                 # 64   flattened medium-term features
N_CHAN = 2 * S                     # 16   conv output channels ([LT block | MT block])
N_CONV_OUT = S * N_CHAN            # 128  conv outputs, position-major: col = l*2S + c
IN_FEATS = 3 * S                   # 24
HIDDEN = floor((3 * S + 1) / 2)    # 12


def dpn_kernel(lt_ref, mt_ref, st_ref, wlt_ref, wmt_ref, w1t_ref, w2t_ref, b2_ref,
               out_ref):
    """One batch tile of the full DeepPredictionNetwork forward.

    lt_ref : (Bt, F_LT)  bf16   flattened LT embeddings
    mt_ref : (Bt, F_MT)  bf16   flattened MT embeddings
    st_ref : (Bt, S)     f32    ST embeddings (V_st)
    wlt_ref: (F_LT, S*2S) bf16  fused im2col LT conv weight (pad taps are zeros)
    wmt_ref: (F_MT, S*2S) bf16  fused im2col MT conv weight
    w1t_ref: (3S, HIDDEN) f32   first Linear, transposed (lane-major matmul)
    w2t_ref: (HIDDEN, 2)  f32   second Linear, transposed
    b2_ref : (1, 2)       f32   second Linear bias
    out_ref: (Bt, 2)      f32
    """
    # Fused LT+MT Conv1d (zero padding folded into the weights): two MXU pushes,
    # f32 accumulation.  Position-major columns: col = l*2S + c.
    conv = (jnp.dot(lt_ref[...], wlt_ref[...], preferred_element_type=jnp.float32)
            + jnp.dot(mt_ref[...], wmt_ref[...], preferred_element_type=jnp.float32))

    # MaxPool1d(kernel_size=S, stride=1) over the S output positions, per channel.
    # Log-tree: 3 lane extractions + 3 maxes instead of 7 + 7.
    if S & (S - 1) == 0:
        v, span = conv, N_CONV_OUT
        while span > N_CHAN:
            half = span // 2
            v = jnp.maximum(v[:, :half], v[:, half:span])
            span = half
    else:  # fallback for non power-of-two S
        v = conv[:, 0:N_CHAN]
        for l in range(1, S):
            v = jnp.maximum(v, conv[:, l * N_CHAN:(l + 1) * N_CHAN])
    # v : (Bt, 2S) = [V_lt | V_mt]

    st = st_ref[...].astype(jnp.float32)                                 # (Bt, S) = V_st

    # featureVector = [V_lt | V_mt | V_st]; Linear(no bias)+Sigmoid as two partial dots.
    w1t = w1t_ref[...]                                                   # (3S, H)
    h = jax.nn.sigmoid(
        jnp.dot(v, w1t[0:N_CHAN, :], preferred_element_type=jnp.float32)
        + jnp.dot(st, w1t[N_CHAN:IN_FEATS, :], preferred_element_type=jnp.float32))

    o = jnp.dot(h, w2t_ref[...], preferred_element_type=jnp.float32) + b2_ref[...]
    out_ref[...] = jax.nn.sigmoid(o).astype(out_ref.dtype)
    # TODO(synk): optional minor win: emit a lane-dense (2, B) output (compute the
    # last linear transposed) to avoid 2-lane masked stores; output traffic is ~1%
    # of input here so it is skipped for simplicity.


def pack_params(wlt, wmt, w1, w2, b2, *, conv_dtype=jnp.bfloat16):
    """One-time, host-side packing of the PyTorch-layout weights (not per call)."""
    wlt = np.asarray(wlt, np.float32)        # (S, LT_DAYS, K) = (out_c, in_c, k)
    wmt = np.asarray(wmt, np.float32)        # (S, MT_DAYS, K)

    # Block-diagonal im2col weights: w[in_day*S + m, l*2S + (+S) + c] = w[c, day, m-l+1]
    # (zero where the tap falls into the pad=1 region).
    wconv_lt = np.zeros((F_LT, N_CONV_OUT), np.float32)
    wconv_mt = np.zeros((F_MT, N_CONV_OUT), np.float32)
    for l in range(S):                       # conv output position
        for k in range(CONV_K):              # kernel tap
            m = l + k - CONV_PAD             # input position; OOB == zero padding
            if 0 <= m < S:
                cols = l * N_CHAN + np.arange(S)
                rows_lt = np.arange(LT_DAYS) * S + m
                wconv_lt[np.ix_(rows_lt, cols)] = wlt[:, :, k].T          # [in_c, out_c]
                rows_mt = np.arange(MT_DAYS) * S + m
                wconv_mt[np.ix_(rows_mt, cols + S)] = wmt[:, :, k].T

    w1t = np.asarray(w1, np.float32).T       # (3S, H)
    w2t = np.asarray(w2, np.float32).T       # (H, 2)
    b2r = np.asarray(b2, np.float32).reshape(1, 2)
    return (jnp.asarray(wconv_lt, conv_dtype), jnp.asarray(wconv_mt, conv_dtype),
            jnp.asarray(w1t), jnp.asarray(w2t), jnp.asarray(b2r))


@functools.partial(jax.jit, static_argnames=("b_tile", "act_dtype"))
def deep_prediction_forward(lt, mt, st, packed, *, b_tile=1024,
                            act_dtype=jnp.bfloat16):
    """lt: (B, LT_DAYS, S)  mt: (B, MT_DAYS, S)  st: (B, 1, S)  ->  (B, 2)."""
    wconv_lt, wconv_mt, w1t, w2t, b2r = packed
    B = lt.shape[0]

    # Free contiguous reshapes; bf16 cast is the only wrapper-side pass (in a real
    # pipeline the activations arrive in bf16 from the producing layer).
    lt2 = lt.reshape(B, F_LT).astype(act_dtype)
    mt2 = mt.reshape(B, F_MT).astype(act_dtype)
    st2 = st.reshape(B, S).astype(jnp.float32)

    # Batch tile: big enough to amortize per-grid-step overhead, small enough for
    # every generation's scoped-VMEM default (v5e 16 MiB).  Ragged batches are
    # handled by cdiv + Pallas boundary masking (no jnp.pad copy).
    bt = b_tile if B > b_tile else B
    grid = (pl.cdiv(B, bt),)

    out = pl.pallas_call(
        dpn_kernel,
        out_shape=jax.ShapeDtypeStruct((B, 2), jnp.float32),
        grid_spec=pltpu.PrefetchScalarGridSpec(
            num_scalar_prefetch=0,
            grid=grid,
            in_specs=[
                pl.BlockSpec((bt, F_LT), lambda b: (b, 0)),          # LT tile
                pl.BlockSpec((bt, F_MT), lambda b: (b, 0)),          # MT tile
                pl.BlockSpec((bt, S), lambda b: (b, 0)),             # ST tile
                pl.BlockSpec((F_LT, N_CONV_OUT), lambda b: (0, 0)),  # grid-invariant weights
                pl.BlockSpec((F_MT, N_CONV_OUT), lambda b: (0, 0)),
                pl.BlockSpec((IN_FEATS, HIDDEN), lambda b: (0, 0)),
                pl.BlockSpec((HIDDEN, 2), lambda b: (0, 0)),
                pl.BlockSpec((1, 2), lambda b: (0, 0)),
            ],
            out_specs=pl.BlockSpec((bt, 2), lambda b: (b, 0)),
        ),
        compiler_params=pltpu.CompilerParams(
            dimension_semantics=("parallel",)),                      # v7x: 2 TCs
    )(lt2, mt2, st2, wconv_lt, wconv_mt, w1t, w2t, b2r)
    return out


def reference_forward(lt, mt, st, params):
    """Pure-JAX reference mirroring the PyTorch forward (NCL conv layout), batched."""
    wlt, wmt, w1, w2, b2 = params

    def feature(xx, w):
        y = lax.conv_general_dilated(xx, w, window_strides=(1,), padding=[(1, 1)],
                                     dimension_numbers=("NCH", "OIH", "NCH"))  # (B, S, S)
        return jnp.max(y, axis=2)                                              # MaxPool1d(kernel=S)

    f = jnp.concatenate([feature(lt, wlt), feature(mt, wmt), st.reshape(-1, S)], axis=1)
    h = jax.nn.sigmoid(f @ w1.T)                   # Linear(no bias) + Sigmoid
    return jax.nn.sigmoid(h @ w2.T + b2)           # Linear(bias) + Sigmoid -> (B, 2)


if __name__ == "__main__":
    key = jax.random.PRNGKey(0)
    k = jax.random.split(key, 8)

    # Deterministic synthetic parameters (shapes from __init__).
    wlt = 0.1 * jax.random.normal(k[0], (S, LT_DAYS, CONV_K), jnp.float32)
    wmt = 0.1 * jax.random.normal(k[1], (S, MT_DAYS, CONV_K), jnp.float32)
    w1 = 0.1 * jax.random.normal(k[2], (HIDDEN, IN_FEATS), jnp.float32)
    w2 = 0.1 * jax.random.normal(k[3], (2, HIDDEN), jnp.float32)
    b2 = 0.1 * jax.random.normal(k[4], (2,), jnp.float32)
    params = (wlt, wmt, w1, w2, b2)
    packed = pack_params(*params)                    # one-time init (im2col + transposes)

    # Batch of samples; each sample is one PyTorch forward ((1,LT,S),(1,MT,S),(1,1,S)).
    B = 200                                          # ragged on purpose
    lt = jax.random.normal(k[5], (B, LT_DAYS, S), jnp.float32)
    mt = jax.random.normal(k[6], (B, MT_DAYS, S), jnp.float32)
    st = jax.random.normal(k[7], (B, 1, S), jnp.float32)

    ref = reference_forward(lt, mt, st, params)

    # 1) default tiling: single full-batch block (B <= b_tile).
    out = jax.block_until_ready(deep_prediction_forward(lt, mt, st, packed))
    assert out.shape == (B, 2)
    err = float(jnp.max(jnp.abs(out - ref)))
    assert err < 1e-2, ("bf16 path mismatch", err)   # bf16 activations -> loosened atol

    # 2) multi-block ragged grid: exercises the masked boundary block (no jnp.pad).
    out2 = jax.block_until_ready(deep_prediction_forward(lt, mt, st, packed, b_tile=64))
    err2 = float(jnp.max(jnp.abs(out2 - ref)))
    assert err2 < 1e-2, ("ragged-grid mismatch", err2)

    print("KERNEL_OK")
</pallas_src>

<mosaic_0001>
module attributes {stable_mosaic.version = 11 : i64} {
  func.func @dpn_kernel(%arg0: i32, %arg1: memref<200x128xbf16, #tpu.memory_space<vmem>>, %arg2: memref<200x64xbf16, #tpu.memory_space<vmem>>, %arg3: memref<200x8xf32, #tpu.memory_space<vmem>>, %arg4: memref<128x128xbf16, #tpu.memory_space<vmem>>, %arg5: memref<64x128xbf16, #tpu.memory_space<vmem>>, %arg6: memref<24x12xf32, #tpu.memory_space<vmem>>, %arg7: memref<12x2xf32, #tpu.memory_space<vmem>>, %arg8: memref<1x2xf32, #tpu.memory_space<vmem>>, %arg9: memref<200x2xf32, #tpu.memory_space<vmem>>) attributes {dimension_semantics = [#tpu.dimension_semantics<parallel>], iteration_bounds = array<i64: 1>, scalar_prefetch = 0 : i64, scratch_operands = 0 : i64, tpu.core_type = #tpu.core_type<tc>, window_params = [{transform_indices = @transform_0, window_bounds = array<i64: 200, 128>}, {transform_indices = @transform_1, window_bounds = array<i64: 200, 64>}, {transform_indices = @transform_2, window_bounds = array<i64: 200, 8>}, {pipeline_mode = #tpu.pipeline_mode<synchronous>, transform_indices = @transform_3, window_bounds = array<i64: 128, 128>}, {pipeline_mode = #tpu.pipeline_mode<synchronous>, transform_indices = @transform_4, window_bounds = array<i64: 64, 128>}, {pipeline_mode = #tpu.pipeline_mode<synchronous>, transform_indices = @transform_5, window_bounds = array<i64: 24, 12>}, {pipeline_mode = #tpu.pipeline_mode<synchronous>, transform_indices = @transform_6, window_bounds = array<i64: 12, 2>}, {pipeline_mode = #tpu.pipeline_mode<synchronous>, transform_indices = @transform_7, window_bounds = array<i64: 1, 2>}, {transform_indices = @transform_8, window_bounds = array<i64: 200, 2>}]} {
    %c0 = arith.constant 0 : index
    %c0_0 = arith.constant 0 : index
    %0 = vector.load %arg1[%c0, %c0_0] : memref<200x128xbf16, #tpu.memory_space<vmem>>, vector<200x128xbf16>
    %c0_1 = arith.constant 0 : index
    %c0_2 = arith.constant 0 : index
    %1 = vector.load %arg4[%c0_1, %c0_2] : memref<128x128xbf16, #tpu.memory_space<vmem>>, vector<128x128xbf16>
    %cst = arith.constant dense<0.000000e+00> : vector<200x128xf32>
    %2 = tpu.matmul %0, %1, %cst {dimension_numbers = #tpu.dot_dimension_numbers<[1], [0], [0], [1], [0, 0, 1, 1], [], []>} : vector<200x128xbf16>, vector<128x128xbf16>, vector<200x128xf32> -> vector<200x128xf32>
    %c0_3 = arith.constant 0 : index
    %c0_4 = arith.constant 0 : index
    %3 = vector.load %arg2[%c0_3, %c0_4] : memref<200x64xbf16, #tpu.memory_space<vmem>>, vector<200x64xbf16>
    %c0_5 = arith.constant 0 : index
    %c0_6 = arith.constant 0 : index
    %4 = vector.load %arg5[%c0_5, %c0_6] : memref<64x128xbf16, #tpu.memory_space<vmem>>, vector<64x128xbf16>
    %cst_7 = arith.constant dense<0.000000e+00> : vector<200x128xf32>
    %5 = tpu.matmul %3, %4, %cst_7 {dimension_numbers = #tpu.dot_dimension_numbers<[1], [0], [0], [1], [0, 0, 1, 1], [], []>} : vector<200x64xbf16>, vector<64x128xbf16>, vector<200x128xf32> -> vector<200x128xf32>
    %6 = arith.addf %2, %5 : vector<200x128xf32>
    %7 = vector.extract_strided_slice %6 {offsets = [0, 0], sizes = [200, 64], strides = [1, 1]} : vector<200x128xf32> to vector<200x64xf32>
    %8 = vector.extract_strided_slice %6 {offsets = [0, 64], sizes = [200, 64], strides = [1, 1]} : vector<200x128xf32> to vector<200x64xf32>
    %9 = arith.maximumf %7, %8 : vector<200x64xf32>
    %10 = vector.extract_strided_slice %9 {offsets = [0, 0], sizes = [200, 32], strides = [1, 1]} : vector<200x64xf32> to vector<200x32xf32>
    %11 = vector.extract_strided_slice %9 {offsets = [0, 32], sizes = [200, 32], strides = [1, 1]} : vector<200x64xf32> to vector<200x32xf32>
    %12 = arith.maximumf %10, %11 : vector<200x32xf32>
    %13 = vector.extract_strided_slice %12 {offsets = [0, 0], sizes = [200, 16], strides = [1, 1]} : vector<200x32xf32> to vector<200x16xf32>
    %14 = vector.extract_strided_slice %12 {offsets = [0, 16], sizes = [200, 16], strides = [1, 1]} : vector<200x32xf32> to vector<200x16xf32>
    %15 = arith.maximumf %13, %14 : vector<200x16xf32>
    %c0_8 = arith.constant 0 : index
    %c0_9 = arith.constant 0 : index
    %16 = vector.load %arg3[%c0_8, %c0_9] : memref<200x8xf32, #tpu.memory_space<vmem>>, vector<200x8xf32>
    %c0_10 = arith.constant 0 : index
    %c0_11 = arith.constant 0 : index
    %17 = vector.load %arg6[%c0_10, %c0_11] : memref<24x12xf32, #tpu.memory_space<vmem>>, vector<24x12xf32>
    %18 = vector.extract_strided_slice %17 {offsets = [0, 0], sizes = [16, 12], strides = [1, 1]} : vector<24x12xf32> to vector<16x12xf32>
    %cst_12 = arith.constant dense<0.000000e+00> : vector<200x12xf32>
    %19 = tpu.matmul %15, %18, %cst_12 {dimension_numbers = #tpu.dot_dimension_numbers<[1], [0], [0], [1], [0, 0, 1, 1], [], []>} : vector<200x16xf32>, vector<16x12xf32>, vector<200x12xf32> -> vector<200x12xf32>
    %20 = vector.extract_strided_slice %17 {offsets = [16, 0], sizes = [8, 12], strides = [1, 1]} : vector<24x12xf32> to vector<8x12xf32>
    %cst_13 = arith.constant dense<0.000000e+00> : vector<200x12xf32>
    %21 = tpu.matmul %16, %20, %cst_13 {dimension_numbers = #tpu.dot_dimension_numbers<[1], [0], [0], [1], [0, 0, 1, 1], [], []>} : vector<200x8xf32>, vector<8x12xf32>, vector<200x12xf32> -> vector<200x12xf32>
    %22 = arith.addf %19, %21 : vector<200x12xf32>
    %23 = arith.negf %22 : vector<200x12xf32>
    %24 = math.exp %23 : vector<200x12xf32>
    %cst_14 = arith.constant 1.000000e+00 : f32
    %25 = vector.broadcast %cst_14 : f32 to vector<200x12xf32>
    %26 = arith.addf %25, %24 : vector<200x12xf32>
    %27 = arith.divf %25, %26 : vector<200x12xf32>
    %c0_15 = arith.constant 0 : index
    %c0_16 = arith.constant 0 : index
    %28 = vector.load %arg7[%c0_15, %c0_16] : memref<12x2xf32, #tpu.memory_space<vmem>>, vector<12x2xf32>
    %cst_17 = arith.constant dense<0.000000e+00> : vector<200x2xf32>
    %29 = tpu.matmul %27, %28, %cst_17 {dimension_numbers = #tpu.dot_dimension_numbers<[1], [0], [0], [1], [0, 0, 1, 1], [], []>} : vector<200x12xf32>, vector<12x2xf32>, vector<200x2xf32> -> vector<200x2xf32>
    %c0_18 = arith.constant 0 : index
    %c0_19 = arith.constant 0 : index
    %30 = vector.load %arg8[%c0_18, %c0_19] : memref<1x2xf32, #tpu.memory_space<vmem>>, vector<1x2xf32>
    %31 = vector.broadcast %30 : vector<1x2xf32> to vector<200x2xf32>
    %32 = arith.addf %29, %31 : vector<200x2xf32>
    %33 = arith.negf %32 : vector<200x2xf32>
    %34 = math.exp %33 : vector<200x2xf32>
    %cst_20 = arith.constant 1.000000e+00 : f32
    %35 = vector.broadcast %cst_20 : f32 to vector<200x2xf32>
    %36 = arith.addf %35, %34 : vector<200x2xf32>
    %37 = arith.divf %35, %36 : vector<200x2xf32>
    %c0_21 = arith.constant 0 : index
    %c0_22 = arith.constant 0 : index
    %38 = vector.load %arg9[%c0_21, %c0_22] : memref<200x2xf32, #tpu.memory_space<vmem>>, vector<200x2xf32>
    tpu.vector_store %arg9[%c0_21, %c0_22], %37 {strides = array<i32>} : memref<200x2xf32, #tpu.memory_space<vmem>>, vector<200x2xf32>,
    return
  }
  func.func @transform_0(%arg0: i32) -> (i32, i32) {
    %c0_i32 = arith.constant 0 : i32
    %c0_i32_0 = arith.constant 0 : i32
    return %arg0, %c0_i32 : i32, i32
  }
  func.func @transform_1(%arg0: i32) -> (i32, i32) {
    %c0_i32 = arith.constant 0 : i32
    %c0_i32_0 = arith.constant 0 : i32
    return %arg0, %c0_i32 : i32, i32
  }
  func.func @transform_2(%arg0: i32) -> (i32, i32) {
    %c0_i32 = arith.constant 0 : i32
    %c0_i32_0 = arith.constant 0 : i32
    return %arg0, %c0_i32 : i32, i32
  }
  func.func @transform_3(%arg0: i32) -> (i32, i32) {
    %c0_i32 = arith.constant 0 : i32
    %c0_i32_0 = arith.constant 0 : i32
    %c0_i32_1 = arith.constant 0 : i32
    return %c0_i32, %c0_i32_0 : i32, i32
  }
  func.func @transform_4(%arg0: i32) -> (i32, i32) {
    %c0_i32 = arith.constant 0 : i32
    %c0_i32_0 = arith.constant 0 : i32
    %c0_i32_1 = arith.constant 0 : i32
    return %c0_i32, %c0_i32_0 : i32, i32
  }
  func.func @transform_5(%arg0: i32) -> (i32, i32) {
    %c0_i32 = arith.constant 0 : i32
    %c0_i32_0 = arith.constant 0 : i32
    %c0_i32_1 = arith.constant 0 : i32
    return %c0_i32, %c0_i32_0 : i32, i32
  }
  func.func @transform_6(%arg0: i32) -> (i32, i32) {
    %c0_i32 = arith.constant 0 : i32
    %c0_i32_0 = arith.constant 0 : i32
    %c0_i32_1 = arith.constant 0 : i32
    return %c0_i32, %c0_i32_0 : i32, i32
  }
  func.func @transform_7(%arg0: i32) -> (i32, i32) {
    %c0_i32 = arith.constant 0 : i32
    %c0_i32_0 = arith.constant 0 : i32
    %c0_i32_1 = arith.constant 0 : i32
    return %c0_i32, %c0_i32_0 : i32, i32
  }
  func.func @transform_8(%arg0: i32) -> (i32, i32) {
    %c0_i32 = arith.constant 0 : i32
    %c0_i32_0 = arith.constant 0 : i32
    return %arg0, %c0_i32 : i32, i32
  }
}

</mosaic_0001>

<llo_original>
// kernel: deep_prediction_forward.1
$region0: #{deep_prediction_forward.1}
  #allocation0 [shape = 'u32[]', space=smem, size = 0x4, offset = 0x4, fixed_abs, tag = 'smem constant byte address 0x4 - core index']
  #allocation1 [shape = 'u32[144,128]{1,0:T(1,128)}', space=vmem, size = 0x12000, scoped, tag = 'internal scratch']
  %s0 = inlined_call_operand.vmem [shape: bf16[200,128], index: 0, kind: input, shape index: {}]
  %s1 = inlined_call_operand.vmem [shape: bf16[200,64], index: 1, kind: input, shape index: {}]
  %s2 = inlined_call_operand.vmem [shape: f32[200,8], index: 2, kind: input, shape index: {}]
  %s3 = inlined_call_operand.vmem [shape: bf16[128,128], index: 3, kind: input, shape index: {}]
  %s4 = inlined_call_operand.vmem [shape: bf16[64,128], index: 4, kind: input, shape index: {}]
  %s5 = inlined_call_operand.vmem [shape: f32[24,12], index: 5, kind: input, shape index: {}]
  %s6 = inlined_call_operand.vmem [shape: f32[12,2], index: 6, kind: input, shape index: {}]
  %s7 = inlined_call_operand.vmem [shape: f32[1,2], index: 7, kind: input, shape index: {}]
  %s8 = inlined_call_operand.vmem [shape: f32[200,2], index: 8, kind: output, shape index: {}]
  %s9 = sld [smem:[#allocation0]]
  $region42: #{deep_prediction_forward.1} parent=0
    _
  %s11 = ssub.s32 1, %s9
  %s12 = scalar_select 0, %s11, %s9
  // Predicated region
  $region2: #{deep_prediction_forward.1} parent=0 // pred_check
    _
  $region3: #{deep_prediction_forward.1} parent=0 // pred_check_branch
    %14 = sbr.rel (0) target = $region5
  $region4: #{deep_prediction_forward.1} parent=0 // pred_region
    _
  $region5: #{deep_prediction_forward.1} parent=0 // pred_fallthru
    _
  // Predicated region
  $region6: #{deep_prediction_forward.1} parent=0 // pred_check
    _
  $region7: #{deep_prediction_forward.1} parent=0 // pred_check_branch
    %16 = sbr.rel (0) target = $region9
  $region8: #{deep_prediction_forward.1} parent=0 // pred_region
    _
  $region9: #{deep_prediction_forward.1} parent=0 // pred_fallthru
    _
  // Predicated region
  $region10: #{deep_prediction_forward.1} parent=0 // pred_check
    _
  $region11: #{deep_prediction_forward.1} parent=0 // pred_check_branch
    %18 = sbr.rel (0) target = $region13
  $region12: #{deep_prediction_forward.1} parent=0 // pred_region
    _
  $region13: #{deep_prediction_forward.1} parent=0 // pred_fallthru
    _
  // Predicated region
  $region14: #{deep_prediction_forward.1} parent=0 // pred_check
    _
  $region15: #{deep_prediction_forward.1} parent=0 // pred_check_branch
    %20 = sbr.rel (0) target = $region17
  $region16: #{deep_prediction_forward.1} parent=0 // pred_region
    _
  $region17: #{deep_prediction_forward.1} parent=0 // pred_fallthru
    _
  // Predicated region
  $region18: #{deep_prediction_forward.1} parent=0 // pred_check
    _
  $region19: #{deep_prediction_forward.1} parent=0 // pred_check_branch
    %22 = sbr.rel (0) target = $region21
  $region20: #{deep_prediction_forward.1} parent=0 // pred_region
    _
  $region21: #{deep_prediction_forward.1} parent=0 // pred_fallthru
    _
  // Predicated region
  $region22: #{deep_prediction_forward.1} parent=0 // pred_check
    _
  $region23: #{deep_prediction_forward.1} parent=0 // pred_check_branch
    %24 = sbr.rel (0) target = $region25
  $region24: #{deep_prediction_forward.1} parent=0 // pred_region
    _
  $region25: #{deep_prediction_forward.1} parent=0 // pred_fallthru
    _
  // Predicated region
  $region26: #{deep_prediction_forward.1} parent=0 // pred_check
    _
  $region27: #{deep_prediction_forward.1} parent=0 // pred_check_branch
    %26 = sbr.rel (0) target = $region29
  $region28: #{deep_prediction_forward.1} parent=0 // pred_region
    _
  $region29: #{deep_prediction_forward.1} parent=0 // pred_fallthru
    _
  // Predicated region
  $region30: #{deep_prediction_forward.1} parent=0 // pred_check
    _
  $region31: #{deep_prediction_forward.1} parent=0 // pred_check_branch
    %28 = sbr.rel (0) target = $region33
  $region32: #{deep_prediction_forward.1} parent=0 // pred_region
    _
  $region33: #{deep_prediction_forward.1} parent=0 // pred_fallthru
    _
  %v30 = vld [vmem:[%s0] sm:$0xf]
  %v31 = vld [vmem:[%s0 + $0x4] sm:$0xf]
  %v32 = vld [vmem:[%s0 + $0x8] sm:$0xf]
  %v33 = vld [vmem:[%s0 + $0xc] sm:$0xf]
  %v34 = vld [vmem:[%s0 + $0x10] sm:$0xf]
  %v35 = vld [vmem:[%s0 + $0x14] sm:$0xf]
  %v36 = vld [vmem:[%s0 + $0x18] sm:$0xf]
  %v37 = vld [vmem:[%s0 + $0x1c] sm:$0xf]
  %v38 = vld [vmem:[%s0 + $0x20] sm:$0xf]
  %v39 = vld [vmem:[%s0 + $0x24] sm:$0xf]
  %v40 = vld [vmem:[%s0 + $0x28] sm:$0xf]
  %v41 = vld [vmem:[%s0 + $0x2c] sm:$0xf]
  %v42 = vld [vmem:[%s0 + $0x30] sm:$0xf]
  %v43 = vld [vmem:[%s0 + $0x34] sm:$0xf]
  %v44 = vld [vmem:[%s0 + $0x38] sm:$0xf]
  %v45 = vld [vmem:[%s0 + $0x3c] sm:$0xf]
  %v46 = vld [vmem:[%s0 + $0x40] sm:$0xf]
  %v47 = vld [vmem:[%s0 + $0x44] sm:$0xf]
  %v48 = vld [vmem:[%s0 + $0x48] sm:$0xf]
  %v49 = vld [vmem:[%s0 + $0x4c] sm:$0xf]
  %v50 = vld [vmem:[%s0 + $0x50] sm:$0xf]
  %v51 = vld [vmem:[%s0 + $0x54] sm:$0xf]
  %v52 = vld [vmem:[%s0 + $0x58] sm:$0xf]
  %v53 = vld [vmem:[%s0 + $0x5c] sm:$0xf]
  %v54 = vld [vmem:[%s0 + $0x60] sm:$0xf]
  %v55 = vld [vmem:[%s3] sm:$0xf]
  %v56 = vld [vmem:[%s3 + $0x4] sm:$0xf]
  %v57 = vld [vmem:[%s3 + $0x8] sm:$0xf]
  %v58 = vld [vmem:[%s3 + $0xc] sm:$0xf]
  %v59 = vld [vmem:[%s3 + $0x10] sm:$0xf]
  %v60 = vld [vmem:[%s3 + $0x14] sm:$0xf]
  %v61 = vld [vmem:[%s3 + $0x18] sm:$0xf]
  %v62 = vld [vmem:[%s3 + $0x1c] sm:$0xf]
  %v63 = vld [vmem:[%s3 + $0x20] sm:$0xf]
  %v64 = vld [vmem:[%s3 + $0x24] sm:$0xf]
  %v65 = vld [vmem:[%s3 + $0x28] sm:$0xf]
  %v66 = vld [vmem:[%s3 + $0x2c] sm:$0xf]
  %v67 = vld [vmem:[%s3 + $0x30] sm:$0xf]
  %v68 = vld [vmem:[%s3 + $0x34] sm:$0xf]
  %v69 = vld [vmem:[%s3 + $0x38] sm:$0xf]
  %v70 = vld [vmem:[%s3 + $0x3c] sm:$0xf]
  %v71 = vld [vmem:[%s1] sm:$0xf]
  %v72 = vld [vmem:[%s1 + $0x4] sm:$0xf]
  %v73 = vld [vmem:[%s1 + $0x8] sm:$0xf]
  %v74 = vld [vmem:[%s1 + $0xc] sm:$0xf]
  %v75 = vld [vmem:[%s1 + $0x10] sm:$0xf]
  %v76 = vld [vmem:[%s1 + $0x14] sm:$0xf]
  %v77 = vld [vmem:[%s1 + $0x18] sm:$0xf]
  %v78 = vld [vmem:[%s1 + $0x1c] sm:$0xf]
  %v79 = vld [vmem:[%s1 + $0x20] sm:$0xf]
  %v80 = vld [vmem:[%s1 + $0x24] sm:$0xf]
  %v81 = vld [vmem:[%s1 + $0x28] sm:$0xf]
  %v82 = vld [vmem:[%s1 + $0x2c] sm:$0xf]
  %v83 = vld [vmem:[%s1 + $0x30] sm:$0xf]
  %v84 = vld [vmem:[%s1 + $0x34] sm:$0xf]
  %v85 = vld [vmem:[%s1 + $0x38] sm:$0xf]
  %v86 = vld [vmem:[%s1 + $0x3c] sm:$0xf]
  %v87 = vld [vmem:[%s1 + $0x40] sm:$0xf]
  %v88 = vld [vmem:[%s1 + $0x44] sm:$0xf]
  %v89 = vld [vmem:[%s1 + $0x48] sm:$0xf]
  %v90 = vld [vmem:[%s1 + $0x4c] sm:$0xf]
  %v91 = vld [vmem:[%s1 + $0x50] sm:$0xf]
  %v92 = vld [vmem:[%s1 + $0x54] sm:$0xf]
  %v93 = vld [vmem:[%s1 + $0x58] sm:$0xf]
  %v94 = vld [vmem:[%s1 + $0x5c] sm:$0xf]
  %v95 = vld [vmem:[%s1 + $0x60] sm:$0xf]
  %v96 = vld [vmem:[%s4] sm:$0xf]
  %v97 = vld [vmem:[%s4 + $0x4] sm:$0xf]
  %v98 = vld [vmem:[%s4 + $0x8] sm:$0xf]
  %v99 = vld [vmem:[%s4 + $0xc] sm:$0xf]
  %v100 = vld [vmem:[%s4 + $0x10] sm:$0xf]
  %v101 = vld [vmem:[%s4 + $0x14] sm:$0xf]
  %v102 = vld [vmem:[%s4 + $0x18] sm:$0xf]
  %v103 = vld [vmem:[%s4 + $0x1c] sm:$0xf]
  %v129 = vunpack.c.l.b16 %v71
  %v130 = vunpack.c.l.b16 %v72
  %v131 = vunpack.c.l.b16 %v73
  %v132 = vunpack.c.l.b16 %v74
  %v133 = vunpack.c.l.b16 %v75
  %v134 = vunpack.c.l.b16 %v76
  %v135 = vunpack.c.l.b16 %v77
  %v136 = vunpack.c.l.b16 %v78
  %v137 = vunpack.c.l.b16 %v79
  %v138 = vunpack.c.l.b16 %v80
  %v139 = vunpack.c.l.b16 %v81
  %v140 = vunpack.c.l.b16 %v82
  %v141 = vunpack.c.l.b16 %v83
  %v142 = vunpack.c.l.b16 %v84
  %v143 = vunpack.c.l.b16 %v85
  %v144 = vunpack.c.l.b16 %v86
  %v145 = vunpack.c.l.b16 %v87
  %v146 = vunpack.c.l.b16 %v88
  %v147 = vunpack.c.l.b16 %v89
  %v148 = vunpack.c.l.b16 %v90
  %v149 = vunpack.c.l.b16 %v91
  %v150 = vunpack.c.l.b16 %v92
  %v151 = vunpack.c.l.b16 %v93
  %v152 = vunpack.c.l.b16 %v94
  %v153 = vunpack.c.l.b16 %v95
  %v154 = vpack.c.b16 %v130, %v129
  %v155 = vpack.c.b16 %v132, %v131
  %v156 = vpack.c.b16 %v134, %v133
  %v157 = vpack.c.b16 %v136, %v135
  %v158 = vpack.c.b16 %v138, %v137
  %v159 = vpack.c.b16 %v140, %v139
  %v160 = vpack.c.b16 %v142, %v141
  %v161 = vpack.c.b16 %v144, %v143
  %v162 = vpack.c.b16 %v146, %v145
  %v163 = vpack.c.b16 %v148, %v147
  %v164 = vpack.c.b16 %v150, %v149
  %v165 = vpack.c.b16 %v152, %v151
  %v166 = vpack.c.b16 %v153, %v153
  %v175 = vunpack.c.l.b16 %v96
  %v176 = vunpack.c.l.b16 %v97
  %v177 = vunpack.c.l.b16 %v98
  %v178 = vunpack.c.l.b16 %v99
  %v179 = vunpack.c.l.b16 %v100
  %v180 = vunpack.c.l.b16 %v101
  %v181 = vunpack.c.l.b16 %v102
  %v182 = vunpack.c.l.b16 %v103
  %v183 = vpack.c.b16 %v176, %v175
  %v184 = vpack.c.b16 %v178, %v177
  %v185 = vpack.c.b16 %v180, %v179
  %v186 = vpack.c.b16 %v182, %v181
  %vm191 = vcmask 523264
  %v193 = vsel %vm191, %v154, 0
  %v196 = vsel %vm191, %v155, 0
  %v199 = vsel %vm191, %v156, 0
  %v202 = vsel %vm191, %v157, 0
  %v205 = vsel %vm191, %v158, 0
  %v208 = vsel %vm191, %v159, 0
  %v211 = vsel %vm191, %v160, 0
  %v214 = vsel %vm191, %v161, 0
  %v217 = vsel %vm191, %v162, 0
  %v220 = vsel %vm191, %v163, 0
  %v223 = vsel %vm191, %v164, 0
  %v226 = vsel %vm191, %v165, 0
  %v229 = vsel %vm191, %v166, 0
  %231 = vmatprep.subr.bf16.mxu0 0
  %232 = vmatpush1.bf16.msra.mxu0 0
  %233 = vmatprep.subr.bf16.mxu0 0
  %234 = vmatpush1.bf16.msra.mxu0 0
  %235 = vmatprep.subr.bf16.mxu0 0
  %236 = vmatpush1.bf16.msra.mxu0 0
  %237 = vmatprep.subr.bf16.mxu0 0
  %238 = vmatpush1.bf16.msra.mxu0 0
  %239 = vmatprep.subr.bf16.mxu0 0
  %240 = vmatpush1.bf16.msra.mxu0 %v186
  %241 = vmatprep.subr.bf16.mxu0 0
  %242 = vmatpush1.bf16.msra.mxu0 %v185
  %243 = vmatprep.subr.bf16.mxu0 0
  %244 = vmatpush1.bf16.msra.mxu0 %v184
  %245 = vmatprep.subr.bf16.mxu0 0
  %246 = vmatpush1.bf16.msra.mxu0 %v183
  %247 = vmatprep.subr.bf16.mxu0 0
  %248 = vmatpush2.bf16.msra.mxu0 0
  %249 = vmatprep.subr.bf16.mxu0 0
  %250 = vmatpush2.bf16.msra.mxu0 0
  %251 = vmatprep.subr.bf16.mxu0 0
  %252 = vmatpush2.bf16.msra.mxu0 0
  %253 = vmatprep.subr.bf16.mxu0 0
  %254 = vmatpush2.bf16.msra.mxu0 0
  %255 = vmatprep.subr.bf16.mxu0 0
  %256 = vmatpush2.bf16.msra.mxu0 0
  %257 = vmatprep.subr.bf16.mxu0 0
  %258 = vmatpush2.bf16.msra.mxu0 0
  %259 = vmatprep.subr.bf16.mxu0 0
  %260 = vmatpush2.bf16.msra.mxu0 0
  %261 = vmatprep.subr.bf16.mxu0 0
  %262 = vmatpush2.bf16.msra.mxu0 0
  %263 = vmatprep.mubr.bf16.mxu0 0
  %264 = vmatmul.mubr.bf16.gmra.mxu0 %v193
  %v265 = vpop.f32.mrf.mxu0
  %v266 = vadd.f32 0.0, %v265
  %v267 = vpop.f32.mrf.mxu0
  %v268 = vpop.f32.mrf.mxu0
  %v269 = vadd.f32 0.0, %v268
  %v270 = vpop.f32.mrf.mxu0
  %271 = vmatprep.mubr.bf16.mxu0 0
  %272 = vmatmul.mubr.bf16.gmra.mxu0 %v196
  %v273 = vpop.f32.mrf.mxu0
  %v274 = vadd.f32 0.0, %v273
  %v275 = vpop.f32.mrf.mxu0
  %v276 = vpop.f32.mrf.mxu0
  %v277 = vadd.f32 0.0, %v276
  %v278 = vpop.f32.mrf.mxu0
  %279 = vmatprep.mubr.bf16.mxu0 0
  %280 = vmatmul.mubr.bf16.gmra.mxu0 %v199
  %v281 = vpop.f32.mrf.mxu0
  %v282 = vadd.f32 0.0, %v281
  %v283 = vpop.f32.mrf.mxu0
  %v284 = vpop.f32.mrf.mxu0
  %v285 = vadd.f32 0.0, %v284
  %v286 = vpop.f32.mrf.mxu0
  %287 = vmatprep.mubr.bf16.mxu0 0
  %288 = vmatmul.mubr.bf16.gmra.mxu0 %v202
  %v289 = vpop.f32.mrf.mxu0
  %v290 = vadd.f32 0.0, %v289
  %v291 = vpop.f32.mrf.mxu0
  %v292 = vpop.f32.mrf.mxu0
  %v293 = vadd.f32 0.0, %v292
  %v294 = vpop.f32.mrf.mxu0
  %295 = vmatprep.mubr.bf16.mxu0 0
  %296 = vmatmul.mubr.bf16.gmra.mxu0 %v205
  %v297 = vpop.f32.mrf.mxu0
  %v298 = vadd.f32 0.0, %v297
  %v299 = vpop.f32.mrf.mxu0
  %v300 = vpop.f32.mrf.mxu0
  %v301 = vadd.f32 0.0, %v300
  %v302 = vpop.f32.mrf.mxu0
  %303 = vmatprep.mubr.bf16.mxu0 0
  %304 = vmatmul.mubr.bf16.gmra.mxu0 %v208
  %v305 = vpop.f32.mrf.mxu0
  %v306 = vadd.f32 0.0, %v305
  %v307 = vpop.f32.mrf.mxu0
  %v308 = vpop.f32.mrf.mxu0
  %v309 = vadd.f32 0.0, %v308
  %v310 = vpop.f32.mrf.mxu0
  %311 = vmatprep.mubr.bf16.mxu0 0
  %312 = vmatmul.mubr.bf16.gmra.mxu0 %v211
  %v313 = vpop.f32.mrf.mxu0
  %v314 = vadd.f32 0.0, %v313
  %v315 = vpop.f32.mrf.mxu0
  %v316 = vpop.f32.mrf.mxu0
  %v317 = vadd.f32 0.0, %v316
  %v318 = vpop.f32.mrf.mxu0
  %319 = vmatprep.mubr.bf16.mxu0 0
  %320 = vmatmul.mubr.bf16.gmra.mxu0 %v214
  %v321 = vpop.f32.mrf.mxu0
  %v322 = vadd.f32 0.0, %v321
  %v323 = vpop.f32.mrf.mxu0
  %v324 = vpop.f32.mrf.mxu0
  %v325 = vadd.f32 0.0, %v324
  %v326 = vpop.f32.mrf.mxu0
  %327 = vmatprep.mubr.bf16.mxu0 0
  %328 = vmatmul.mubr.bf16.gmra.mxu0 %v217
  %v329 = vpop.f32.mrf.mxu0
  %v330 = vadd.f32 0.0, %v329
  %v331 = vpop.f32.mrf.mxu0
  %v332 = vpop.f32.mrf.mxu0
  %v333 = vadd.f32 0.0, %v332
  %v334 = vpop.f32.mrf.mxu0
  %335 = vmatprep.mubr.bf16.mxu0 0
  %336 = vmatmul.mubr.bf16.gmra.mxu0 %v220
  %v337 = vpop.f32.mrf.mxu0
  %v338 = vadd.f32 0.0, %v337
  %v339 = vpop.f32.mrf.mxu0
  %v340 = vpop.f32.mrf.mxu0
  %v341 = vadd.f32 0.0, %v340
  %v342 = vpop.f32.mrf.mxu0
  %343 = vmatprep.mubr.bf16.mxu0 0
  %344 = vmatmul.mubr.bf16.gmra.mxu0 %v223
  %v345 = vpop.f32.mrf.mxu0
  %v346 = vadd.f32 0.0, %v345
  %v347 = vpop.f32.mrf.mxu0
  %v348 = vpop.f32.mrf.mxu0
  %v349 = vadd.f32 0.0, %v348
  %v350 = vpop.f32.mrf.mxu0
  %351 = vmatprep.mubr.bf16.mxu0 0
  %352 = vmatmul.mubr.bf16.gmra.mxu0 %v226
  %v353 = vpop.f32.mrf.mxu0
  %v354 = vadd.f32 0.0, %v353
  %v355 = vpop.f32.mrf.mxu0
  %v356 = vpop.f32.mrf.mxu0
  %v357 = vadd.f32 0.0, %v356
  %v358 = vpop.f32.mrf.mxu0
  %359 = vmatprep.mubr.bf16.mxu0 0
  %360 = vmatmul.mubr.bf16.gmra.mxu0 %v229
  %v361 = vpop.f32.mrf.mxu0
  %v362 = vadd.f32 0.0, %v361
  %v363 = vpop.f32.mrf.mxu0
  %v364 = vpop.f32.mrf.mxu0
  %v365 = vpop.f32.mrf.mxu0
  %366 = vdwg.mxu0
  %v392 = vunpack.c.l.b16 %v30
  %v393 = vunpack.c.l.b16 %v31
  %v394 = vunpack.c.l.b16 %v32
  %v395 = vunpack.c.l.b16 %v33
  %v396 = vunpack.c.l.b16 %v34
  %v397 = vunpack.c.l.b16 %v35
  %v398 = vunpack.c.l.b16 %v36
  %v399 = vunpack.c.l.b16 %v37
  %v400 = vunpack.c.l.b16 %v38
  %v401 = vunpack.c.l.b16 %v39
  %v402 = vunpack.c.l.b16 %v40
  %v403 = vunpack.c.l.b16 %v41
  %v404 = vunpack.c.l.b16 %v42
  %v405 = vunpack.c.l.b16 %v43
  %v406 = vunpack.c.l.b16 %v44
  %v407 = vunpack.c.l.b16 %v45
  %v408 = vunpack.c.l.b16 %v46
  %v409 = vunpack.c.l.b16 %v47
  %v410 = vunpack.c.l.b16 %v48
  %v411 = vunpack.c.l.b16 %v49
  %v412 = vunpack.c.l.b16 %v50
  %v413 = vunpack.c.l.b16 %v51
  %v414 = vunpack.c.l.b16 %v52
  %v415 = vunpack.c.l.b16 %v53
  %v416 = vunpack.c.l.b16 %v54
  %v417 = vpack.c.b16 %v393, %v392
  %v418 = vpack.c.b16 %v395, %v394
  %v419 = vpack.c.b16 %v397, %v396
  %v420 = vpack.c.b16 %v399, %v398
  %v421 = vpack.c.b16 %v401, %v400
  %v422 = vpack.c.b16 %v403, %v402
  %v423 = vpack.c.b16 %v405, %v404
  %v424 = vpack.c.b16 %v407, %v406
  %v425 = vpack.c.b16 %v409, %v408
  %v426 = vpack.c.b16 %v411, %v410
  %v427 = vpack.c.b16 %v413, %v412
  %v428 = vpack.c.b16 %v415, %v414
  %v429 = vpack.c.b16 %v416, %v416
  %v459 = vunpack.c.l.b16 %v55
  %v460 = vunpack.c.l.b16 %v56
  %v461 = vunpack.c.l.b16 %v57
  %v462 = vunpack.c.l.b16 %v58
  %v463 = vunpack.c.l.b16 %v59
  %v464 = vunpack.c.l.b16 %v60
  %v465 = vunpack.c.l.b16 %v61
  %v466 = vunpack.c.l.b16 %v62
  %v467 = vunpack.c.l.b16 %v63
  %v468 = vunpack.c.l.b16 %v64
  %v469 = vunpack.c.l.b16 %v65
  %v470 = vunpack.c.l.b16 %v66
  %v471 = vunpack.c.l.b16 %v67
  %v472 = vunpack.c.l.b16 %v68
  %v473 = vunpack.c.l.b16 %v69
  %v474 = vunpack.c.l.b16 %v70
  %v475 = vpack.c.b16 %v460, %v459
  %v476 = vpack.c.b16 %v462, %v461
  %v477 = vpack.c.b16 %v464, %v463
  %v478 = vpack.c.b16 %v466, %v465
  %v479 = vpack.c.b16 %v468, %v467
  %v480 = vpack.c.b16 %v470, %v469
  %v481 = vpack.c.b16 %v472, %v471
  %v482 = vpack.c.b16 %v474, %v473
  %491 = vmatprep.subr.bf16.mxu0 0
  %492 = vmatpush1.bf16.msra.mxu0 %v482
  %493 = vmatprep.subr.bf16.mxu0 0
  %494 = vmatpush1.bf16.msra.mxu0 %v481
  %495 = vmatprep.subr.bf16.mxu0 0
  %496 = vmatpush1.bf16.msra.mxu0 %v480
  %497 = vmatprep.subr.bf16.mxu0 0
  %498 = vmatpush1.bf16.msra.mxu0 %v479
  %499 = vmatprep.subr.bf16.mxu0 0
  %500 = vmatpush1.bf16.msra.mxu0 %v478
  %501 = vmatprep.subr.bf16.mxu0 0
  %502 = vmatpush1.bf16.msra.mxu0 %v477
  %503 = vmatprep.subr.bf16.mxu0 0
  %504 = vmatpush1.bf16.msra.mxu0 %v476
  %505 = vmatprep.subr.bf16.mxu0 0
  %506 = vmatpush1.bf16.msra.mxu0 %v475
  %507 = vmatprep.subr.bf16.mxu0 0
  %508 = vmatpush2.bf16.msra.mxu0 0
  %509 = vmatprep.subr.bf16.mxu0 0
  %510 = vmatpush2.bf16.msra.mxu0 0
  %511 = vmatprep.subr.bf16.mxu0 0
  %512 = vmatpush2.bf16.msra.mxu0 0
  %513 = vmatprep.subr.bf16.mxu0 0
  %514 = vmatpush2.bf16.msra.mxu0 0
  %515 = vmatprep.subr.bf16.mxu0 0
  %516 = vmatpush2.bf16.msra.mxu0 0
  %517 = vmatprep.subr.bf16.mxu0 0
  %518 = vmatpush2.bf16.msra.mxu0 0
  %519 = vmatprep.subr.bf16.mxu0 0
  %520 = vmatpush2.bf16.msra.mxu0 0
  %521 = vmatprep.subr.bf16.mxu0 0
  %522 = vmatpush2.bf16.msra.mxu0 0
  %523 = vmatprep.mubr.bf16.mxu0 0
  %524 = vmatmul.mubr.bf16.gmra.mxu0 %v417
  %v525 = vpop.f32.mrf.mxu0
  %v526 = vadd.f32 %v266, %v525
  %v527 = vpop.f32.mrf.mxu0
  %v528 = vpop.f32.mrf.mxu0
  %v529 = vadd.f32 %v269, %v528
  %v530 = vpop.f32.mrf.mxu0
  %531 = vmatprep.mubr.bf16.mxu0 0
  %532 = vmatmul.mubr.bf16.gmra.mxu0 %v418
  %v533 = vpop.f32.mrf.mxu0
  %v534 = vadd.f32 %v274, %v533
  %v535 = vpop.f32.mrf.mxu0
  %v536 = vpop.f32.mrf.mxu0
  %v537 = vadd.f32 %v277, %v536
  %v538 = vpop.f32.mrf.mxu0
  %539 = vmatprep.mubr.bf16.mxu0 0
  %540 = vmatmul.mubr.bf16.gmra.mxu0 %v419
  %v541 = vpop.f32.mrf.mxu0
  %v542 = vadd.f32 %v282, %v541
  %v543 = vpop.f32.mrf.mxu0
  %v544 = vpop.f32.mrf.mxu0
  %v545 = vadd.f32 %v285, %v544
  %v546 = vpop.f32.mrf.mxu0
  %547 = vmatprep.mubr.bf16.mxu0 0
  %548 = vmatmul.mubr.bf16.gmra.mxu0 %v420
  %v549 = vpop.f32.mrf.mxu0
  %v550 = vadd.f32 %v290, %v549
  %v551 = vpop.f32.mrf.mxu0
  %v552 = vpop.f32.mrf.mxu0
  %v553 = vadd.f32 %v293, %v552
  %v554 = vpop.f32.mrf.mxu0
  %555 = vmatprep.mubr.bf16.mxu0 0
  %556 = vmatmul.mubr.bf16.gmra.mxu0 %v421
  %v557 = vpop.f32.mrf.mxu0
  %v558 = vadd.f32 %v298, %v557
  %v559 = vpop.f32.mrf.mxu0
  %v560 = vpop.f32.mrf.mxu0
  %v561 = vadd.f32 %v301, %v560
  %v562 = vpop.f32.mrf.mxu0
  %563 = vmatprep.mubr.bf16.mxu0 0
  %564 = vmatmul.mubr.bf16.gmra.mxu0 %v422
  %v565 = vpop.f32.mrf.mxu0
  %v566 = vadd.f32 %v306, %v565
  %v567 = vpop.f32.mrf.mxu0
  %v568 = vpop.f32.mrf.mxu0
  %v569 = vadd.f32 %v309, %v568
  %v570 = vpop.f32.mrf.mxu0
  %571 = vmatprep.mubr.bf16.mxu0 0
  %572 = vmatmul.mubr.bf16.gmra.mxu0 %v423
  %v573 = vpop.f32.mrf.mxu0
  %v574 = vadd.f32 %v314, %v573
  %v575 = vpop.f32.mrf.mxu0
  %v576 = vpop.f32.mrf.mxu0
  %v577 = vadd.f32 %v317, %v576
  %v578 = vpop.f32.mrf.mxu0
  %579 = vmatprep.mubr.bf16.mxu0 0
  %580 = vmatmul.mubr.bf16.gmra.mxu0 %v424
  %v581 = vpop.f32.mrf.mxu0
  %v582 = vadd.f32 %v322, %v581
  %v583 = vpop.f32.mrf.mxu0
  %v584 = vpop.f32.mrf.mxu0
  %v585 = vadd.f32 %v325, %v584
  %v586 = vpop.f32.mrf.mxu0
  %587 = vmatprep.mubr.bf16.mxu0 0
  %588 = vmatmul.mubr.bf16.gmra.mxu0 %v425
  %v589 = vpop.f32.mrf.mxu0
  %v590 = vadd.f32 %v330, %v589
  %v591 = vpop.f32.mrf.mxu0
  %v592 = vpop.f32.mrf.mxu0
  %v593 = vadd.f32 %v333, %v592
  %v594 = vpop.f32.mrf.mxu0
  %595 = vmatprep.mubr.bf16.mxu0 0
  %596 = vmatmul.mubr.bf16.gmra.mxu0 %v426
  %v597 = vpop.f32.mrf.mxu0
  %v598 = vadd.f32 %v338, %v597
  %v599 = vpop.f32.mrf.mxu0
  %v600 = vpop.f32.mrf.mxu0
  %v601 = vadd.f32 %v341, %v600
  %v602 = vpop.f32.mrf.mxu0
  %603 = vmatprep.mubr.bf16.mxu0 0
  %604 = vmatmul.mubr.bf16.gmra.mxu0 %v427
  %v605 = vpop.f32.mrf.mxu0
  %v606 = vadd.f32 %v346, %v605
  %v607 = vpop.f32.mrf.mxu0
  %v608 = vpop.f32.mrf.mxu0
  %v609 = vadd.f32 %v349, %v608
  %v610 = vpop.f32.mrf.mxu0
  %611 = vmatprep.mubr.bf16.mxu0 0
  %612 = vmatmul.mubr.bf16.gmra.mxu0 %v428
  %v613 = vpop.f32.mrf.mxu0
  %v614 = vadd.f32 %v354, %v613
  %v615 = vpop.f32.mrf.mxu0
  %v616 = vpop.f32.mrf.mxu0
  %v617 = vadd.f32 %v357, %v616
  %v618 = vpop.f32.mrf.mxu0
  %619 = vmatprep.mubr.bf16.mxu0 0
  %620 = vmatmul.mubr.bf16.gmra.mxu0 %v429
  %v621 = vpop.f32.mrf.mxu0
  %v622 = vadd.f32 %v362, %v621
  %v623 = vpop.f32.mrf.mxu0
  %v624 = vpop.f32.mrf.mxu0
  %v625 = vpop.f32.mrf.mxu0
  %626 = vdwg.mxu0
  %652 = vrot.lane.b32.xlu0 %v526, 64
  %v653 = vpop.permute.xlu0 %652
  %654 = vrot.lane.b32.xlu0 %v529, 64
  %v655 = vpop.permute.xlu0 %654
  %656 = vrot.lane.b32.xlu0 %v534, 64
  %v657 = vpop.permute.xlu0 %656
  %658 = vrot.lane.b32.xlu0 %v537, 64
  %v659 = vpop.permute.xlu0 %658
  %660 = vrot.lane.b32.xlu0 %v542, 64
  %v661 = vpop.permute.xlu0 %660
  %662 = vrot.lane.b32.xlu0 %v545, 64
  %v663 = vpop.permute.xlu0 %662
  %664 = vrot.lane.b32.xlu0 %v550, 64
  %v665 = vpop.permute.xlu0 %664
  %666 = vrot.lane.b32.xlu0 %v553, 64
  %v667 = vpop.permute.xlu0 %666
  %668 = vrot.lane.b32.xlu0 %v558, 64
  %v669 = vpop.permute.xlu0 %668
  %670 = vrot.lane.b32.xlu0 %v561, 64
  %v671 = vpop.permute.xlu0 %670
  %672 = vrot.lane.b32.xlu0 %v566, 64
  %v673 = vpop.permute.xlu0 %672
  %674 = vrot.lane.b32.xlu0 %v569, 64
  %v675 = vpop.permute.xlu0 %674
  %676 = vrot.lane.b32.xlu0 %v574, 64
  %v677 = vpop.permute.xlu0 %676
  %678 = vrot.lane.b32.xlu0 %v577, 64
  %v679 = vpop.permute.xlu0 %678
  %680 = vrot.lane.b32.xlu0 %v582, 64
  %v681 = vpop.permute.xlu0 %680
  %682 = vrot.lane.b32.xlu0 %v585, 64
  %v683 = vpop.permute.xlu0 %682
  %684 = vrot.lane.b32.xlu0 %v590, 64
  %v685 = vpop.permute.xlu0 %684
  %686 = vrot.lane.b32.xlu0 %v593, 64
  %v687 = vpop.permute.xlu0 %686
  %688 = vrot.lane.b32.xlu0 %v598, 64
  %v689 = vpop.permute.xlu0 %688
  %690 = vrot.lane.b32.xlu0 %v601, 64
  %v691 = vpop.permute.xlu0 %690
  %692 = vrot.lane.b32.xlu0 %v606, 64
  %v693 = vpop.permute.xlu0 %692
  %694 = vrot.lane.b32.xlu0 %v609, 64
  %v695 = vpop.permute.xlu0 %694
  %696 = vrot.lane.b32.xlu0 %v614, 64
  %v697 = vpop.permute.xlu0 %696
  %698 = vrot.lane.b32.xlu0 %v617, 64
  %v699 = vpop.permute.xlu0 %698
  %700 = vrot.lane.b32.xlu0 %v622, 64
  %v701 = vpop.permute.xlu0 %700
  %v727 = vmax.f32 %v526, %v653
  %v728 = vmax.f32 %v529, %v655
  %v729 = vmax.f32 %v534, %v657
  %v730 = vmax.f32 %v537, %v659
  %v731 = vmax.f32 %v542, %v661
  %v732 = vmax.f32 %v545, %v663
  %v733 = vmax.f32 %v550, %v665
  %v734 = vmax.f32 %v553, %v667
  %v735 = vmax.f32 %v558, %v669
  %v736 = vmax.f32 %v561, %v671
  %v737 = vmax.f32 %v566, %v673
  %v738 = vmax.f32 %v569, %v675
  %v739 = vmax.f32 %v574, %v677
  %v740 = vmax.f32 %v577, %v679
  %v741 = vmax.f32 %v582, %v681
  %v742 = vmax.f32 %v585, %v683
  %v743 = vmax.f32 %v590, %v685
  %v744 = vmax.f32 %v593, %v687
  %v745 = vmax.f32 %v598, %v689
  %v746 = vmax.f32 %v601, %v691
  %v747 = vmax.f32 %v606, %v693
  %v748 = vmax.f32 %v609, %v695
  %v749 = vmax.f32 %v614, %v697
  %v750 = vmax.f32 %v617, %v699
  %v751 = vmax.f32 %v622, %v701
  %777 = vrot.lane.b32.xlu0 %v727, 96
  %v778 = vpop.permute.xlu0 %777
  %779 = vrot.lane.b32.xlu0 %v728, 96
  %v780 = vpop.permute.xlu0 %779
  %781 = vrot.lane.b32.xlu0 %v729, 96
  %v782 = vpop.permute.xlu0 %781
  %783 = vrot.lane.b32.xlu0 %v730, 96
  %v784 = vpop.permute.xlu0 %783
  %785 = vrot.lane.b32.xlu0 %v731, 96
  %v786 = vpop.permute.xlu0 %785
  %787 = vrot.lane.b32.xlu0 %v732, 96
  %v788 = vpop.permute.xlu0 %787
  %789 = vrot.lane.b32.xlu0 %v733, 96
  %v790 = vpop.permute.xlu0 %789
  %791 = vrot.lane.b32.xlu0 %v734, 96
  %v792 = vpop.permute.xlu0 %791
  %793 = vrot.lane.b32.xlu0 %v735, 96
  %v794 = vpop.permute.xlu0 %793
  %795 = vrot.lane.b32.xlu0 %v736, 96
  %v796 = vpop.permute.xlu0 %795
  %797 = vrot.lane.b32.xlu0 %v737, 96
  %v798 = vpop.permute.xlu0 %797
  %799 = vrot.lane.b32.xlu0 %v738, 96
  %v800 = vpop.permute.xlu0 %799
  %801 = vrot.lane.b32.xlu0 %v739, 96
  %v802 = vpop.permute.xlu0 %801
  %803 = vrot.lane.b32.xlu0 %v740, 96
  %v804 = vpop.permute.xlu0 %803
  %805 = vrot.lane.b32.xlu0 %v741, 96
  %v806 = vpop.permute.xlu0 %805
  %807 = vrot.lane.b32.xlu0 %v742, 96
  %v808 = vpop.permute.xlu0 %807
  %809 = vrot.lane.b32.xlu0 %v743, 96
  %v810 = vpop.permute.xlu0 %809
  %811 = vrot.lane.b32.xlu0 %v744, 96
  %v812 = vpop.permute.xlu0 %811
  %813 = vrot.lane.b32.xlu0 %v745, 96
  %v814 = vpop.permute.xlu0 %813
  %815 = vrot.lane.b32.xlu0 %v746, 96
  %v816 = vpop.permute.xlu0 %815
  %817 = vrot.lane.b32.xlu0 %v747, 96
  %v818 = vpop.permute.xlu0 %817
  %819 = vrot.lane.b32.xlu0 %v748, 96
  %v820 = vpop.permute.xlu0 %819
  %821 = vrot.lane.b32.xlu0 %v749, 96
  %v822 = vpop.permute.xlu0 %821
  %823 = vrot.lane.b32.xlu0 %v750, 96
  %v824 = vpop.permute.xlu0 %823
  %825 = vrot.lane.b32.xlu0 %v751, 96
  %v826 = vpop.permute.xlu0 %825
  %v852 = vmax.f32 %v727, %v778
  %v853 = vmax.f32 %v728, %v780
  %v854 = vmax.f32 %v729, %v782
  %v855 = vmax.f32 %v730, %v784
  %v856 = vmax.f32 %v731, %v786
  %v857 = vmax.f32 %v732, %v788
  %v858 = vmax.f32 %v733, %v790
  %v859 = vmax.f32 %v734, %v792
  %v860 = vmax.f32 %v735, %v794
  %v861 = vmax.f32 %v736, %v796
  %v862 = vmax.f32 %v737, %v798
  %v863 = vmax.f32 %v738, %v800
  %v864 = vmax.f32 %v739, %v802
  %v865 = vmax.f32 %v740, %v804
  %v866 = vmax.f32 %v741, %v806
  %v867 = vmax.f32 %v742, %v808
  %v868 = vmax.f32 %v743, %v810
  %v869 = vmax.f32 %v744, %v812
  %v870 = vmax.f32 %v745, %v814
  %v871 = vmax.f32 %v746, %v816
  %v872 = vmax.f32 %v747, %v818
  %v873 = vmax.f32 %v748, %v820
  %v874 = vmax.f32 %v749, %v822
  %v875 = vmax.f32 %v750, %v824
  %v876 = vmax.f32 %v751, %v826
  %902 = vrot.lane.b32.xlu0 %v852, 112
  %v903 = vpop.permute.xlu0 %902
  %904 = vrot.lane.b32.xlu0 %v853, 112
  %v905 = vpop.permute.xlu0 %904
  %906 = vrot.lane.b32.xlu0 %v854, 112
  %v907 = vpop.permute.xlu0 %906
  %908 = vrot.lane.b32.xlu0 %v855, 112
  %v909 = vpop.permute.xlu0 %908
  %910 = vrot.lane.b32.xlu0 %v856, 112
  %v911 = vpop.permute.xlu0 %910
  %912 = vrot.lane.b32.xlu0 %v857, 112
  %v913 = vpop.permute.xlu0 %912
  %914 = vrot.lane.b32.xlu0 %v858, 112
  %v915 = vpop.permute.xlu0 %914
  %916 = vrot.lane.b32.xlu0 %v859, 112
  %v917 = vpop.permute.xlu0 %916
  %918 = vrot.lane.b32.xlu0 %v860, 112
  %v919 = vpop.permute.xlu0 %918
  %920 = vrot.lane.b32.xlu0 %v861, 112
  %v921 = vpop.permute.xlu0 %920
  %922 = vrot.lane.b32.xlu0 %v862, 112
  %v923 = vpop.permute.xlu0 %922
  %924 = vrot.lane.b32.xlu0 %v863, 112
  %v925 = vpop.permute.xlu0 %924
  %926 = vrot.lane.b32.xlu0 %v864, 112
  %v927 = vpop.permute.xlu0 %926
  %928 = vrot.lane.b32.xlu0 %v865, 112
  %v929 = vpop.permute.xlu0 %928
  %930 = vrot.lane.b32.xlu0 %v866, 112
  %v931 = vpop.permute.xlu0 %930
  %932 = vrot.lane.b32.xlu0 %v867, 112
  %v933 = vpop.permute.xlu0 %932
  %934 = vrot.lane.b32.xlu0 %v868, 112
  %v935 = vpop.permute.xlu0 %934
  %936 = vrot.lane.b32.xlu0 %v869, 112
  %v937 = vpop.permute.xlu0 %936
  %938 = vrot.lane.b32.xlu0 %v870, 112
  %v939 = vpop.permute.xlu0 %938
  %940 = vrot.lane.b32.xlu0 %v871, 112
  %v941 = vpop.permute.xlu0 %940
  %942 = vrot.lane.b32.xlu0 %v872, 112
  %v943 = vpop.permute.xlu0 %942
  %944 = vrot.lane.b32.xlu0 %v873, 112
  %v945 = vpop.permute.xlu0 %944
  %946 = vrot.lane.b32.xlu0 %v874, 112
  %v947 = vpop.permute.xlu0 %946
  %948 = vrot.lane.b32.xlu0 %v875, 112
  %v949 = vpop.permute.xlu0 %948
  %950 = vrot.lane.b32.xlu0 %v876, 112
  %v951 = vpop.permute.xlu0 %950
  %v977 = vmax.f32 %v852, %v903
  %v978 = vmax.f32 %v853, %v905
  %v979 = vmax.f32 %v854, %v907
  %v980 = vmax.f32 %v855, %v909
  %v981 = vmax.f32 %v856, %v911
  %v982 = vmax.f32 %v857, %v913
  %v983 = vmax.f32 %v858, %v915
  %v984 = vmax.f32 %v859, %v917
  %v985 = vmax.f32 %v860, %v919
  %v986 = vmax.f32 %v861, %v921
  %v987 = vmax.f32 %v862, %v923
  %v988 = vmax.f32 %v863, %v925
  %v989 = vmax.f32 %v864, %v927
  %v990 = vmax.f32 %v865, %v929
  %v991 = vmax.f32 %v866, %v931
  %v992 = vmax.f32 %v867, %v933
  %v993 = vmax.f32 %v868, %v935
  %v994 = vmax.f32 %v869, %v937
  %v995 = vmax.f32 %v870, %v939
  %v996 = vmax.f32 %v871, %v941
  %v997 = vmax.f32 %v872, %v943
  %v998 = vmax.f32 %v873, %v945
  %v999 = vmax.f32 %v874, %v947
  %v1000 = vmax.f32 %v875, %v949
  %v1001 = vmax.f32 %v876, %v951
  %v1002 = vld [vmem:[%s2] sm:$0xff]
  %v1003 = vld [vmem:[%s2 + $0x8] sm:$0xff]
  %v1004 = vld [vmem:[%s2 + $0x10] sm:$0xff]
  %v1005 = vld [vmem:[%s2 + $0x18] sm:$0xff]
  %v1006 = vld [vmem:[%s2 + $0x20] sm:$0xff]
  %v1007 = vld [vmem:[%s2 + $0x28] sm:$0xff]
  %v1008 = vld [vmem:[%s2 + $0x30] sm:$0xff]
  %v1009 = vld [vmem:[%s2 + $0x38] sm:$0xff]
  %v1010 = vld [vmem:[%s2 + $0x40] sm:$0xff]
  %v1011 = vld [vmem:[%s2 + $0x48] sm:$0xff]
  %v1012 = vld [vmem:[%s2 + $0x50] sm:$0xff]
  %v1013 = vld [vmem:[%s2 + $0x58] sm:$0xff]
  %v1014 = vld [vmem:[%s2 + $0x60] sm:$0xff]
  %v1015 = vld [vmem:[%s2 + $0x68] sm:$0xff]
  %v1016 = vld [vmem:[%s2 + $0x70] sm:$0xff]
  %v1017 = vld [vmem:[%s2 + $0x78] sm:$0xff]
  %v1018 = vld [vmem:[%s2 + $0x80] sm:$0xff]
  %v1019 = vld [vmem:[%s2 + $0x88] sm:$0xff]
  %v1020 = vld [vmem:[%s2 + $0x90] sm:$0xff]
  %v1021 = vld [vmem:[%s2 + $0x98] sm:$0xff]
  %v1022 = vld [vmem:[%s2 + $0xa0] sm:$0xff]
  %v1023 = vld [vmem:[%s2 + $0xa8] sm:$0xff]
  %v1024 = vld [vmem:[%s2 + $0xb0] sm:$0xff]
  %v1025 = vld [vmem:[%s2 + $0xb8] sm:$0xff]
  %v1026 = vld [vmem:[%s2 + $0xc0] sm:$0xff]
  %v1027 = vld [vmem:[%s5] sm:$0xff]
  %v1028 = vld [vmem:[%s5 + $0x8] sm:$0xff]
  %v1029 = vld [vmem:[%s5 + $0x10] sm:$0xff]
  %vm1030 = vcmask 64512
  %v1032 = vsel %vm1030, %v1002, 0
  %v1035 = vsel %vm1030, %v1003, 0
  %v1038 = vsel %vm1030, %v1004, 0
  %v1041 = vsel %vm1030, %v1005, 0
  %v1044 = vsel %vm1030, %v1006, 0
  %v1047 = vsel %vm1030, %v1007, 0
  %v1050 = vsel %vm1030, %v1008, 0
  %v1053 = vsel %vm1030, %v1009, 0
  %v1056 = vsel %vm1030, %v1010, 0
  %v1059 = vsel %vm1030, %v1011, 0
  %v1062 = vsel %vm1030, %v1012, 0
  %v1065 = vsel %vm1030, %v1013, 0
  %v1068 = vsel %vm1030, %v1014, 0
  %v1071 = vsel %vm1030, %v1015, 0
  %v1074 = vsel %vm1030, %v1016, 0
  %v1077 = vsel %vm1030, %v1017, 0
  %v1080 = vsel %vm1030, %v1018, 0
  %v1083 = vsel %vm1030, %v1019, 0
  %v1086 = vsel %vm1030, %v1020, 0
  %v1089 = vsel %vm1030, %v1021, 0
  %v1092 = vsel %vm1030, %v1022, 0
  %v1095 = vsel %vm1030, %v1023, 0
  %v1098 = vsel %vm1030, %v1024, 0
  %v1101 = vsel %vm1030, %v1025, 0
  %v1104 = vsel %vm1030, %v1026, 0
  %1106 = vmatprep.subr.mxu0 0.0
  %1107 = vmatpush1.msra.mxu0 0.0
  %1108 = vmatprep.subr.mxu0 0.0
  %1109 = vmatpush1.msra.mxu0 0.0
  %1110 = vmatprep.subr.mxu0 0.0
  %1111 = vmatpush1.msra.mxu0 0.0
  %1112 = vmatprep.subr.mxu0 0.0
  %1113 = vmatpush1.msra.mxu0 0.0
  %1114 = vmatprep.subr.mxu0 0.0
  %1115 = vmatpush1.msra.mxu0 0.0
  %1116 = vmatprep.subr.mxu0 0.0
  %1117 = vmatpush1.msra.mxu0 0.0
  %1118 = vmatprep.subr.mxu0 0.0
  %1119 = vmatpush1.msra.mxu0 0.0
  %1120 = vmatprep.subr.mxu0 0.0
  %1121 = vmatpush1.msra.mxu0 0.0
  %1122 = vmatprep.subr.mxu0 0.0
  %1123 = vmatpush1.msra.mxu0 0.0
  %1124 = vmatprep.subr.mxu0 0.0
  %1125 = vmatpush1.msra.mxu0 0.0
  %1126 = vmatprep.subr.mxu0 0.0
  %1127 = vmatpush1.msra.mxu0 0.0
  %1128 = vmatprep.subr.mxu0 0.0
  %1129 = vmatpush1.msra.mxu0 0.0
  %1130 = vmatprep.subr.mxu0 0.0
  %1131 = vmatpush1.msra.mxu0 0.0
  %1132 = vmatprep.subr.mxu0 0.0
  %1133 = vmatpush1.msra.mxu0 0.0
  %1134 = vmatprep.subr.mxu0 0.0
  %1135 = vmatpush1.msra.mxu0 0.0
  %1136 = vmatprep.subr.mxu0 0.0
  %1137 = vmatpush1.msra.mxu0 %v1029
  %1138 = vmatprep.subr.mxu0 0.0
  %1139 = vmatpush2.msra.mxu0 0.0
  %1140 = vmatprep.subr.mxu0 0.0
  %1141 = vmatpush2.msra.mxu0 0.0
  %1142 = vmatprep.subr.mxu0 0.0
  %1143 = vmatpush2.msra.mxu0 0.0
  %1144 = vmatprep.subr.mxu0 0.0
  %1145 = vmatpush2.msra.mxu0 0.0
  %1146 = vmatprep.subr.mxu0 0.0
  %1147 = vmatpush2.msra.mxu0 0.0
  %1148 = vmatprep.subr.mxu0 0.0
  %1149 = vmatpush2.msra.mxu0 0.0
  %1150 = vmatprep.subr.mxu0 0.0
  %1151 = vmatpush2.msra.mxu0 0.0
  %1152 = vmatprep.subr.mxu0 0.0
  %1153 = vmatpush2.msra.mxu0 0.0
  %1154 = vmatprep.subr.mxu0 0.0
  %1155 = vmatpush2.msra.mxu0 0.0
  %1156 = vmatprep.subr.mxu0 0.0
  %1157 = vmatpush2.msra.mxu0 0.0
  %1158 = vmatprep.subr.mxu0 0.0
  %1159 = vmatpush2.msra.mxu0 0.0
  %1160 = vmatprep.subr.mxu0 0.0
  %1161 = vmatpush2.msra.mxu0 0.0
  %1162 = vmatprep.subr.mxu0 0.0
  %1163 = vmatpush2.msra.mxu0 0.0
  %1164 = vmatprep.subr.mxu0 0.0
  %1165 = vmatpush2.msra.mxu0 0.0
  %1166 = vmatprep.subr.mxu0 0.0
  %1167 = vmatpush2.msra.mxu0 0.0
  %1168 = vmatprep.subr.mxu0 0.0
  %1169 = vmatpush2.msra.mxu0 0.0
  %1170 = vmatprep.mubr.f32.mxu0 0.0
  %1171 = vmatmul.mubr.f32.gmra.mxu0 %v1032
  %v1172 = vpop.f32.mrf.mxu0
  %v1173 = vadd.f32 0.0, %v1172
  %v1174 = vpop.f32.mrf.mxu0
  %1175 = vmatprep.mubr.f32.mxu0 0.0
  %1176 = vmatmul.mubr.f32.gmra.mxu0 %v1035
  %v1177 = vpop.f32.mrf.mxu0
  %v1178 = vadd.f32 0.0, %v1177
  %v1179 = vpop.f32.mrf.mxu0
  %1180 = vmatprep.mubr.f32.mxu0 0.0
  %1181 = vmatmul.mubr.f32.gmra.mxu0 %v1038
  %v1182 = vpop.f32.mrf.mxu0
  %v1183 = vadd.f32 0.0, %v1182
  %v1184 = vpop.f32.mrf.mxu0
  %1185 = vmatprep.mubr.f32.mxu0 0.0
  %1186 = vmatmul.mubr.f32.gmra.mxu0 %v1041
  %v1187 = vpop.f32.mrf.mxu0
  %v1188 = vadd.f32 0.0, %v1187
  %v1189 = vpop.f32.mrf.mxu0
  %1190 = vmatprep.mubr.f32.mxu0 0.0
  %1191 = vmatmul.mubr.f32.gmra.mxu0 %v1044
  %v1192 = vpop.f32.mrf.mxu0
  %v1193 = vadd.f32 0.0, %v1192
  %v1194 = vpop.f32.mrf.mxu0
  %1195 = vmatprep.mubr.f32.mxu0 0.0
  %1196 = vmatmul.mubr.f32.gmra.mxu0 %v1047
  %v1197 = vpop.f32.mrf.mxu0
  %v1198 = vadd.f32 0.0, %v1197
  %v1199 = vpop.f32.mrf.mxu0
  %1200 = vmatprep.mubr.f32.mxu0 0.0
  %1201 = vmatmul.mubr.f32.gmra.mxu0 %v1050
  %v1202 = vpop.f32.mrf.mxu0
  %v1203 = vadd.f32 0.0, %v1202
  %v1204 = vpop.f32.mrf.mxu0
  %1205 = vmatprep.mubr.f32.mxu0 0.0
  %1206 = vmatmul.mubr.f32.gmra.mxu0 %v1053
  %v1207 = vpop.f32.mrf.mxu0
  %v1208 = vadd.f32 0.0, %v1207
  %v1209 = vpop.f32.mrf.mxu0
  %1210 = vmatprep.mubr.f32.mxu0 0.0
  %1211 = vmatmul.mubr.f32.gmra.mxu0 %v1056
  %v1212 = vpop.f32.mrf.mxu0
  %v1213 = vadd.f32 0.0, %v1212
  %v1214 = vpop.f32.mrf.mxu0
  %1215 = vmatprep.mubr.f32.mxu0 0.0
  %1216 = vmatmul.mubr.f32.gmra.mxu0 %v1059
  %v1217 = vpop.f32.mrf.mxu0
  %v1218 = vadd.f32 0.0, %v1217
  %v1219 = vpop.f32.mrf.mxu0
  %1220 = vmatprep.mubr.f32.mxu0 0.0
  %1221 = vmatmul.mubr.f32.gmra.mxu0 %v1062
  %v1222 = vpop.f32.mrf.mxu0
  %v1223 = vadd.f32 0.0, %v1222
  %v1224 = vpop.f32.mrf.mxu0
  %1225 = vmatprep.mubr.f32.mxu0 0.0
  %1226 = vmatmul.mubr.f32.gmra.mxu0 %v1065
  %v1227 = vpop.f32.mrf.mxu0
  %v1228 = vadd.f32 0.0, %v1227
  %v1229 = vpop.f32.mrf.mxu0
  %1230 = vmatprep.mubr.f32.mxu0 0.0
  %1231 = vmatmul.mubr.f32.gmra.mxu0 %v1068
  %v1232 = vpop.f32.mrf.mxu0
  %v1233 = vadd.f32 0.0, %v1232
  %v1234 = vpop.f32.mrf.mxu0
  %1235 = vmatprep.mubr.f32.mxu0 0.0
  %1236 = vmatmul.mubr.f32.gmra.mxu0 %v1071
  %v1237 = vpop.f32.mrf.mxu0
  %v1238 = vadd.f32 0.0, %v1237
  %v1239 = vpop.f32.mrf.mxu0
  %1240 = vmatprep.mubr.f32.mxu0 0.0
  %1241 = vmatmul.mubr.f32.gmra.mxu0 %v1074
  %v1242 = vpop.f32.mrf.mxu0
  %v1243 = vadd.f32 0.0, %v1242
  %v1244 = vpop.f32.mrf.mxu0
  %1245 = vmatprep.mubr.f32.mxu0 0.0
  %1246 = vmatmul.mubr.f32.gmra.mxu0 %v1077
  %v1247 = vpop.f32.mrf.mxu0
  %v1248 = vadd.f32 0.0, %v1247
  %v1249 = vpop.f32.mrf.mxu0
  %1250 = vmatprep.mubr.f32.mxu0 0.0
  %1251 = vmatmul.mubr.f32.gmra.mxu0 %v1080
  %v1252 = vpop.f32.mrf.mxu0
  %v1253 = vadd.f32 0.0, %v1252
  %v1254 = vpop.f32.mrf.mxu0
  %1255 = vmatprep.mubr.f32.mxu0 0.0
  %1256 = vmatmul.mubr.f32.gmra.mxu0 %v1083
  %v1257 = vpop.f32.mrf.mxu0
  %v1258 = vadd.f32 0.0, %v1257
  %v1259 = vpop.f32.mrf.mxu0
  %1260 = vmatprep.mubr.f32.mxu0 0.0
  %1261 = vmatmul.mubr.f32.gmra.mxu0 %v1086
  %v1262 = vpop.f32.mrf.mxu0
  %v1263 = vadd.f32 0.0, %v1262
  %v1264 = vpop.f32.mrf.mxu0
  %1265 = vmatprep.mubr.f32.mxu0 0.0
  %1266 = vmatmul.mubr.f32.gmra.mxu0 %v1089
  %v1267 = vpop.f32.mrf.mxu0
  %v1268 = vadd.f32 0.0, %v1267
  %v1269 = vpop.f32.mrf.mxu0
  %1270 = vmatprep.mubr.f32.mxu0 0.0
  %1271 = vmatmul.mubr.f32.gmra.mxu0 %v1092
  %v1272 = vpop.f32.mrf.mxu0
  %v1273 = vadd.f32 0.0, %v1272
  %v1274 = vpop.f32.mrf.mxu0
  %1275 = vmatprep.mubr.f32.mxu0 0.0
  %1276 = vmatmul.mubr.f32.gmra.mxu0 %v1095
  %v1277 = vpop.f32.mrf.mxu0
  %v1278 = vadd.f32 0.0, %v1277
  %v1279 = vpop.f32.mrf.mxu0
  %1280 = vmatprep.mubr.f32.mxu0 0.0
  %1281 = vmatmul.mubr.f32.gmra.mxu0 %v1098
  %v1282 = vpop.f32.mrf.mxu0
  %v1283 = vadd.f32 0.0, %v1282
  %v1284 = vpop.f32.mrf.mxu0
  %1285 = vmatprep.mubr.f32.mxu0 0.0
  %1286 = vmatmul.mubr.f32.gmra.mxu0 %v1101
  %v1287 = vpop.f32.mrf.mxu0
  %v1288 = vadd.f32 0.0, %v1287
  %v1289 = vpop.f32.mrf.mxu0
  %1290 = vmatprep.mubr.f32.mxu0 0.0
  %1291 = vmatmul.mubr.f32.gmra.mxu0 %v1104
  %v1292 = vpop.f32.mrf.mxu0
  %v1293 = vadd.f32 0.0, %v1292
  %v1294 = vpop.f32.mrf.mxu0
  %1295 = vdwg.mxu0
  %vm1296 = vcmask 130048
  %v1298 = vsel %vm1296, %v977, 0
  %v1301 = vsel %vm1296, %v978, 0
  %v1304 = vsel %vm1296, %v979, 0
  %v1307 = vsel %vm1296, %v980, 0
  %v1310 = vsel %vm1296, %v981, 0
  %v1313 = vsel %vm1296, %v982, 0
  %v1316 = vsel %vm1296, %v983, 0
  %v1319 = vsel %vm1296, %v984, 0
  %v1322 = vsel %vm1296, %v985, 0
  %v1325 = vsel %vm1296, %v986, 0
  %v1328 = vsel %vm1296, %v987, 0
  %v1331 = vsel %vm1296, %v988, 0
  %v1334 = vsel %vm1296, %v989, 0
  %v1337 = vsel %vm1296, %v990, 0
  %v1340 = vsel %vm1296, %v991, 0
  %v1343 = vsel %vm1296, %v992, 0
  %v1346 = vsel %vm1296, %v993, 0
  %v1349 = vsel %vm1296, %v994, 0
  %v1352 = vsel %vm1296, %v995, 0
  %v1355 = vsel %vm1296, %v996, 0
  %v1358 = vsel %vm1296, %v997, 0
  %v1361 = vsel %vm1296, %v998, 0
  %v1364 = vsel %vm1296, %v999, 0
  %v1367 = vsel %vm1296, %v1000, 0
  %v1370 = vsel %vm1296, %v1001, 0
  %1372 = vmatprep.subr.mxu0 0.0
  %1373 = vmatpush1.msra.mxu0 0.0
  %1374 = vmatprep.subr.mxu0 0.0
  %1375 = vmatpush1.msra.mxu0 0.0
  %1376 = vmatprep.subr.mxu0 0.0
  %1377 = vmatpush1.msra.mxu0 0.0
  %1378 = vmatprep.subr.mxu0 0.0
  %1379 = vmatpush1.msra.mxu0 0.0
  %1380 = vmatprep.subr.mxu0 0.0
  %1381 = vmatpush1.msra.mxu0 0.0
  %1382 = vmatprep.subr.mxu0 0.0
  %1383 = vmatpush1.msra.mxu0 0.0
  %1384 = vmatprep.subr.mxu0 0.0
  %1385 = vmatpush1.msra.mxu0 0.0
  %1386 = vmatprep.subr.mxu0 0.0
  %1387 = vmatpush1.msra.mxu0 0.0
  %1388 = vmatprep.subr.mxu0 0.0
  %1389 = vmatpush1.msra.mxu0 0.0
  %1390 = vmatprep.subr.mxu0 0.0
  %1391 = vmatpush1.msra.mxu0 0.0
  %1392 = vmatprep.subr.mxu0 0.0
  %1393 = vmatpush1.msra.mxu0 0.0
  %1394 = vmatprep.subr.mxu0 0.0
  %1395 = vmatpush1.msra.mxu0 0.0
  %1396 = vmatprep.subr.mxu0 0.0
  %1397 = vmatpush1.msra.mxu0 0.0
  %1398 = vmatprep.subr.mxu0 0.0
  %1399 = vmatpush1.msra.mxu0 0.0
  %1400 = vmatprep.subr.mxu0 0.0
  %1401 = vmatpush1.msra.mxu0 %v1028
  %1402 = vmatprep.subr.mxu0 0.0
  %1403 = vmatpush1.msra.mxu0 %v1027
  %1404 = vmatprep.subr.mxu0 0.0
  %1405 = vmatpush2.msra.mxu0 0.0
  %1406 = vmatprep.subr.mxu0 0.0
  %1407 = vmatpush2.msra.mxu0 0.0
  %1408 = vmatprep.subr.mxu0 0.0
  %1409 = vmatpush2.msra.mxu0 0.0
  %1410 = vmatprep.subr.mxu0 0.0
  %1411 = vmatpush2.msra.mxu0 0.0
  %1412 = vmatprep.subr.mxu0 0.0
  %1413 = vmatpush2.msra.mxu0 0.0
  %1414 = vmatprep.subr.mxu0 0.0
  %1415 = vmatpush2.msra.mxu0 0.0
  %1416 = vmatprep.subr.mxu0 0.0
  %1417 = vmatpush2.msra.mxu0 0.0
  %1418 = vmatprep.subr.mxu0 0.0
  %1419 = vmatpush2.msra.mxu0 0.0
  %1420 = vmatprep.subr.mxu0 0.0
  %1421 = vmatpush2.msra.mxu0 0.0
  %1422 = vmatprep.subr.mxu0 0.0
  %1423 = vmatpush2.msra.mxu0 0.0
  %1424 = vmatprep.subr.mxu0 0.0
  %1425 = vmatpush2.msra.mxu0 0.0
  %1426 = vmatprep.subr.mxu0 0.0
  %1427 = vmatpush2.msra.mxu0 0.0
  %1428 = vmatprep.subr.mxu0 0.0
  %1429 = vmatpush2.msra.mxu0 0.0
  %1430 = vmatprep.subr.mxu0 0.0
  %1431 = vmatpush2.msra.mxu0 0.0
  %1432 = vmatprep.subr.mxu0 0.0
  %1433 = vmatpush2.msra.mxu0 0.0
  %1434 = vmatprep.subr.mxu0 0.0
  %1435 = vmatpush2.msra.mxu0 0.0
  %1436 = vmatprep.mubr.f32.mxu0 0.0
  %1437 = vmatmul.mubr.f32.gmra.mxu0 %v1298
  %v1438 = vpop.f32.mrf.mxu0
  %v1439 = vadd.f32 %v1173, %v1438
  %v1440 = vpop.f32.mrf.mxu0
  %1441 = vmatprep.mubr.f32.mxu0 0.0
  %1442 = vmatmul.mubr.f32.gmra.mxu0 %v1301
  %v1443 = vpop.f32.mrf.mxu0
  %v1444 = vadd.f32 %v1178, %v1443
  %v1445 = vpop.f32.mrf.mxu0
  %1446 = vmatprep.mubr.f32.mxu0 0.0
  %1447 = vmatmul.mubr.f32.gmra.mxu0 %v1304
  %v1448 = vpop.f32.mrf.mxu0
  %v1449 = vadd.f32 %v1183, %v1448
  %v1450 = vpop.f32.mrf.mxu0
  %1451 = vmatprep.mubr.f32.mxu0 0.0
  %1452 = vmatmul.mubr.f32.gmra.mxu0 %v1307
  %v1453 = vpop.f32.mrf.mxu0
  %v1454 = vadd.f32 %v1188, %v1453
  %v1455 = vpop.f32.mrf.mxu0
  %1456 = vmatprep.mubr.f32.mxu0 0.0
  %1457 = vmatmul.mubr.f32.gmra.mxu0 %v1310
  %v1458 = vpop.f32.mrf.mxu0
  %v1459 = vadd.f32 %v1193, %v1458
  %v1460 = vpop.f32.mrf.mxu0
  %1461 = vmatprep.mubr.f32.mxu0 0.0
  %1462 = vmatmul.mubr.f32.gmra.mxu0 %v1313
  %v1463 = vpop.f32.mrf.mxu0
  %v1464 = vadd.f32 %v1198, %v1463
  %v1465 = vpop.f32.mrf.mxu0
  %1466 = vmatprep.mubr.f32.mxu0 0.0
  %1467 = vmatmul.mubr.f32.gmra.mxu0 %v1316
  %v1468 = vpop.f32.mrf.mxu0
  %v1469 = vadd.f32 %v1203, %v1468
  %v1470 = vpop.f32.mrf.mxu0
  %1471 = vmatprep.mubr.f32.mxu0 0.0
  %1472 = vmatmul.mubr.f32.gmra.mxu0 %v1319
  %v1473 = vpop.f32.mrf.mxu0
  %v1474 = vadd.f32 %v1208, %v1473
  %v1475 = vpop.f32.mrf.mxu0
  %1476 = vmatprep.mubr.f32.mxu0 0.0
  %1477 = vmatmul.mubr.f32.gmra.mxu0 %v1322
  %v1478 = vpop.f32.mrf.mxu0
  %v1479 = vadd.f32 %v1213, %v1478
  %v1480 = vpop.f32.mrf.mxu0
  %1481 = vmatprep.mubr.f32.mxu0 0.0
  %1482 = vmatmul.mubr.f32.gmra.mxu0 %v1325
  %v1483 = vpop.f32.mrf.mxu0
  %v1484 = vadd.f32 %v1218, %v1483
  %v1485 = vpop.f32.mrf.mxu0
  %1486 = vmatprep.mubr.f32.mxu0 0.0
  %1487 = vmatmul.mubr.f32.gmra.mxu0 %v1328
  %v1488 = vpop.f32.mrf.mxu0
  %v1489 = vadd.f32 %v1223, %v1488
  %v1490 = vpop.f32.mrf.mxu0
  %1491 = vmatprep.mubr.f32.mxu0 0.0
  %1492 = vmatmul.mubr.f32.gmra.mxu0 %v1331
  %v1493 = vpop.f32.mrf.mxu0
  %v1494 = vadd.f32 %v1228, %v1493
  %v1495 = vpop.f32.mrf.mxu0
  %1496 = vmatprep.mubr.f32.mxu0 0.0
  %1497 = vmatmul.mubr.f32.gmra.mxu0 %v1334
  %v1498 = vpop.f32.mrf.mxu0
  %v1499 = vadd.f32 %v1233, %v1498
  %v1500 = vpop.f32.mrf.mxu0
  %1501 = vmatprep.mubr.f32.mxu0 0.0
  %1502 = vmatmul.mubr.f32.gmra.mxu0 %v1337
  %v1503 = vpop.f32.mrf.mxu0
  %v1504 = vadd.f32 %v1238, %v1503
  %v1505 = vpop.f32.mrf.mxu0
  %1506 = vmatprep.mubr.f32.mxu0 0.0
  %1507 = vmatmul.mubr.f32.gmra.mxu0 %v1340
  %v1508 = vpop.f32.mrf.mxu0
  %v1509 = vadd.f32 %v1243, %v1508
  %v1510 = vpop.f32.mrf.mxu0
  %1511 = vmatprep.mubr.f32.mxu0 0.0
  %1512 = vmatmul.mubr.f32.gmra.mxu0 %v1343
  %v1513 = vpop.f32.mrf.mxu0
  %v1514 = vadd.f32 %v1248, %v1513
  %v1515 = vpop.f32.mrf.mxu0
  %1516 = vmatprep.mubr.f32.mxu0 0.0
  %1517 = vmatmul.mubr.f32.gmra.mxu0 %v1346
  %v1518 = vpop.f32.mrf.mxu0
  %v1519 = vadd.f32 %v1253, %v1518
  %v1520 = vpop.f32.mrf.mxu0
  %1521 = vmatprep.mubr.f32.mxu0 0.0
  %1522 = vmatmul.mubr.f32.gmra.mxu0 %v1349
  %v1523 = vpop.f32.mrf.mxu0
  %v1524 = vadd.f32 %v1258, %v1523
  %v1525 = vpop.f32.mrf.mxu0
  %1526 = vmatprep.mubr.f32.mxu0 0.0
  %1527 = vmatmul.mubr.f32.gmra.mxu0 %v1352
  %v1528 = vpop.f32.mrf.mxu0
  %v1529 = vadd.f32 %v1263, %v1528
  %v1530 = vpop.f32.mrf.mxu0
  %1531 = vmatprep.mubr.f32.mxu0 0.0
  %1532 = vmatmul.mubr.f32.gmra.mxu0 %v1355
  %v1533 = vpop.f32.mrf.mxu0
  %v1534 = vadd.f32 %v1268, %v1533
  %v1535 = vpop.f32.mrf.mxu0
  %1536 = vmatprep.mubr.f32.mxu0 0.0
  %1537 = vmatmul.mubr.f32.gmra.mxu0 %v1358
  %v1538 = vpop.f32.mrf.mxu0
  %v1539 = vadd.f32 %v1273, %v1538
  %v1540 = vpop.f32.mrf.mxu0
  %1541 = vmatprep.mubr.f32.mxu0 0.0
  %1542 = vmatmul.mubr.f32.gmra.mxu0 %v1361
  %v1543 = vpop.f32.mrf.mxu0
  %v1544 = vadd.f32 %v1278, %v1543
  %v1545 = vpop.f32.mrf.mxu0
  %1546 = vmatprep.mubr.f32.mxu0 0.0
  %1547 = vmatmul.mubr.f32.gmra.mxu0 %v1364
  %v1548 = vpop.f32.mrf.mxu0
  %v1549 = vadd.f32 %v1283, %v1548
  %v1550 = vpop.f32.mrf.mxu0
  %1551 = vmatprep.mubr.f32.mxu0 0.0
  %1552 = vmatmul.mubr.f32.gmra.mxu0 %v1367
  %v1553 = vpop.f32.mrf.mxu0
  %v1554 = vadd.f32 %v1288, %v1553
  %v1555 = vpop.f32.mrf.mxu0
  %1556 = vmatprep.mubr.f32.mxu0 0.0
  %1557 = vmatmul.mubr.f32.gmra.mxu0 %v1370
  %v1558 = vpop.f32.mrf.mxu0
  %v1559 = vadd.f32 %v1293, %v1558
  %v1560 = vpop.f32.mrf.mxu0
  %1561 = vdwg.mxu0
  %v1562 = vxor.u32 %v1439, 2147483648
  %v1563 = vxor.u32 %v1444, 2147483648
  %v1564 = vxor.u32 %v1449, 2147483648
  %v1565 = vxor.u32 %v1454, 2147483648
  %v1566 = vxor.u32 %v1459, 2147483648
  %v1567 = vxor.u32 %v1464, 2147483648
  %v1568 = vxor.u32 %v1469, 2147483648
  %v1569 = vxor.u32 %v1474, 2147483648
  %v1570 = vxor.u32 %v1479, 2147483648
  %v1571 = vxor.u32 %v1484, 2147483648
  %v1572 = vxor.u32 %v1489, 2147483648
  %v1573 = vxor.u32 %v1494, 2147483648
  %v1574 = vxor.u32 %v1499, 2147483648
  %v1575 = vxor.u32 %v1504, 2147483648
  %v1576 = vxor.u32 %v1509, 2147483648
  %v1577 = vxor.u32 %v1514, 2147483648
  %v1578 = vxor.u32 %v1519, 2147483648
  %v1579 = vxor.u32 %v1524, 2147483648
  %v1580 = vxor.u32 %v1529, 2147483648
  %v1581 = vxor.u32 %v1534, 2147483648
  %v1582 = vxor.u32 %v1539, 2147483648
  %v1583 = vxor.u32 %v1544, 2147483648
  %v1584 = vxor.u32 %v1549, 2147483648
  %v1585 = vxor.u32 %v1554, 2147483648
  %v1586 = vxor.u32 %v1559, 2147483648
  %v1587 = vmul.f32 %v1562, 1.442695
  %v1588 = vpow.pop %v1587
  %v1589 = vmul.f32 %v1563, 1.442695
  %v1590 = vpow.pop %v1589
  %v1591 = vmul.f32 %v1564, 1.442695
  %v1592 = vpow.pop %v1591
  %v1593 = vmul.f32 %v1565, 1.442695
  %v1594 = vpow.pop %v1593
  %v1595 = vmul.f32 %v1566, 1.442695
  %v1596 = vpow.pop %v1595
  %v1597 = vmul.f32 %v1567, 1.442695
  %v1598 = vpow.pop %v1597
  %v1599 = vmul.f32 %v1568, 1.442695
  %v1600 = vpow.pop %v1599
  %v1601 = vmul.f32 %v1569, 1.442695
  %v1602 = vpow.pop %v1601
  %v1603 = vmul.f32 %v1570, 1.442695
  %v1604 = vpow.pop %v1603
  %v1605 = vmul.f32 %v1571, 1.442695
  %v1606 = vpow.pop %v1605
  %v1607 = vmul.f32 %v1572, 1.442695
  %v1608 = vpow.pop %v1607
  %v1609 = vmul.f32 %v1573, 1.442695
  %v1610 = vpow.pop %v1609
  %v1611 = vmul.f32 %v1574, 1.442695
  %v1612 = vpow.pop %v1611
  %v1613 = vmul.f32 %v1575, 1.442695
  %v1614 = vpow.pop %v1613
  %v1615 = vmul.f32 %v1576, 1.442695
  %v1616 = vpow.pop %v1615
  %v1617 = vmul.f32 %v1577, 1.442695
  %v1618 = vpow.pop %v1617
  %v1619 = vmul.f32 %v1578, 1.442695
  %v1620 = vpow.pop %v1619
  %v1621 = vmul.f32 %v1579, 1.442695
  %v1622 = vpow.pop %v1621
  %v1623 = vmul.f32 %v1580, 1.442695
  %v1624 = vpow.pop %v1623
  %v1625 = vmul.f32 %v1581, 1.442695
  %v1626 = vpow.pop %v1625
  %v1627 = vmul.f32 %v1582, 1.442695
  %v1628 = vpow.pop %v1627
  %v1629 = vmul.f32 %v1583, 1.442695
  %v1630 = vpow.pop %v1629
  %v1631 = vmul.f32 %v1584, 1.442695
  %v1632 = vpow.pop %v1631
  %v1633 = vmul.f32 %v1585, 1.442695
  %v1634 = vpow.pop %v1633
  %v1635 = vmul.f32 %v1586, 1.442695
  %v1636 = vpow.pop %v1635
  %v1637 = vadd.f32 %v1588, 1.0
  %v1638 = vadd.f32 %v1590, 1.0
  %v1639 = vadd.f32 %v1592, 1.0
  %v1640 = vadd.f32 %v1594, 1.0
  %v1641 = vadd.f32 %v1596, 1.0
  %v1642 = vadd.f32 %v1598, 1.0
  %v1643 = vadd.f32 %v1600, 1.0
  %v1644 = vadd.f32 %v1602, 1.0
  %v1645 = vadd.f32 %v1604, 1.0
  %v1646 = vadd.f32 %v1606, 1.0
  %v1647 = vadd.f32 %v1608, 1.0
  %v1648 = vadd.f32 %v1610, 1.0
  %v1649 = vadd.f32 %v1612, 1.0
  %v1650 = vadd.f32 %v1614, 1.0
  %v1651 = vadd.f32 %v1616, 1.0
  %v1652 = vadd.f32 %v1618, 1.0
  %v1653 = vadd.f32 %v1620, 1.0
  %v1654 = vadd.f32 %v1622, 1.0
  %v1655 = vadd.f32 %v1624, 1.0
  %v1656 = vadd.f32 %v1626, 1.0
  %v1657 = vadd.f32 %v1628, 1.0
  %v1658 = vadd.f32 %v1630, 1.0
  %v1659 = vadd.f32 %v1632, 1.0
  %v1660 = vadd.f32 %v1634, 1.0
  %v1661 = vadd.f32 %v1636, 1.0
  %v1662 = vrcp.pop %v1637
  %v1663 = vmul.f32 1.0, %v1662
  %v1664 = vrcp.pop %v1638
  %v1665 = vmul.f32 1.0, %v1664
  %v1666 = vrcp.pop %v1639
  %v1667 = vmul.f32 1.0, %v1666
  %v1668 = vrcp.pop %v1640
  %v1669 = vmul.f32 1.0, %v1668
  %v1670 = vrcp.pop %v1641
  %v1671 = vmul.f32 1.0, %v1670
  %v1672 = vrcp.pop %v1642
  %v1673 = vmul.f32 1.0, %v1672
  %v1674 = vrcp.pop %v1643
  %v1675 = vmul.f32 1.0, %v1674
  %v1676 = vrcp.pop %v1644
  %v1677 = vmul.f32 1.0, %v1676
  %v1678 = vrcp.pop %v1645
  %v1679 = vmul.f32 1.0, %v1678
  %v1680 = vrcp.pop %v1646
  %v1681 = vmul.f32 1.0, %v1680
  %v1682 = vrcp.pop %v1647
  %v1683 = vmul.f32 1.0, %v1682
  %v1684 = vrcp.pop %v1648
  %v1685 = vmul.f32 1.0, %v1684
  %v1686 = vrcp.pop %v1649
  %v1687 = vmul.f32 1.0, %v1686
  %v1688 = vrcp.pop %v1650
  %v1689 = vmul.f32 1.0, %v1688
  %v1690 = vrcp.pop %v1651
  %v1691 = vmul.f32 1.0, %v1690
  %v1692 = vrcp.pop %v1652
  %v1693 = vmul.f32 1.0, %v1692
  %v1694 = vrcp.pop %v1653
  %v1695 = vmul.f32 1.0, %v1694
  %v1696 = vrcp.pop %v1654
  %v1697 = vmul.f32 1.0, %v1696
  %v1698 = vrcp.pop %v1655
  %v1699 = vmul.f32 1.0, %v1698
  %v1700 = vrcp.pop %v1656
  %v1701 = vmul.f32 1.0, %v1700
  %v1702 = vrcp.pop %v1657
  %v1703 = vmul.f32 1.0, %v1702
  %v1704 = vrcp.pop %v1658
  %v1705 = vmul.f32 1.0, %v1704
  %v1706 = vrcp.pop %v1659
  %v1707 = vmul.f32 1.0, %v1706
  %v1708 = vrcp.pop %v1660
  %v1709 = vmul.f32 1.0, %v1708
  %v1710 = vrcp.pop %v1661
  %v1711 = vmul.f32 1.0, %v1710
  %v1712 = vld [vmem:[%s6] sm:$0xff]
  %v1713 = vld [vmem:[%s6 + $0x8] sm:$0xf]
  %v1714 = vld [vmem:[%s7] sm:$0x1]
  %v1716 = vlaneseq
  %v1717 = vshrl.u32 %v1716, 7
  %v1718 = vsub.s32 0, %v1717
  %v1719 = vrot.slane %v1714, %v1718
  %vm1721 = vcmask 97280
  %v1723 = vsel %vm1721, %v1663, 0
  %v1726 = vsel %vm1721, %v1665, 0
  %v1729 = vsel %vm1721, %v1667, 0
  %v1732 = vsel %vm1721, %v1669, 0
  %v1735 = vsel %vm1721, %v1671, 0
  %v1738 = vsel %vm1721, %v1673, 0
  %v1741 = vsel %vm1721, %v1675, 0
  %v1744 = vsel %vm1721, %v1677, 0
  %v1747 = vsel %vm1721, %v1679, 0
  %v1750 = vsel %vm1721, %v1681, 0
  %v1753 = vsel %vm1721, %v1683, 0
  %v1756 = vsel %vm1721, %v1685, 0
  %v1759 = vsel %vm1721, %v1687, 0
  %v1762 = vsel %vm1721, %v1689, 0
  %v1765 = vsel %vm1721, %v1691, 0
  %v1768 = vsel %vm1721, %v1693, 0
  %v1771 = vsel %vm1721, %v1695, 0
  %v1774 = vsel %vm1721, %v1697, 0
  %v1777 = vsel %vm1721, %v1699, 0
  %v1780 = vsel %vm1721, %v1701, 0
  %v1783 = vsel %vm1721, %v1703, 0
  %v1786 = vsel %vm1721, %v1705, 0
  %v1789 = vsel %vm1721, %v1707, 0
  %v1792 = vsel %vm1721, %v1709, 0
  %v1795 = vsel %vm1721, %v1711, 0
  %vm1797 = vcmask 1043456
  %v1799 = vsel %vm1797, %v1713, 0
  %1801 = vmatprep.subr.mxu0 0.0
  %1802 = vmatpush1.msra.mxu0 0.0
  %1803 = vmatprep.subr.mxu0 0.0
  %1804 = vmatpush1.msra.mxu0 0.0
  %1805 = vmatprep.subr.mxu0 0.0
  %1806 = vmatpush1.msra.mxu0 0.0
  %1807 = vmatprep.subr.mxu0 0.0
  %1808 = vmatpush1.msra.mxu0 0.0
  %1809 = vmatprep.subr.mxu0 0.0
  %1810 = vmatpush1.msra.mxu0 0.0
  %1811 = vmatprep.subr.mxu0 0.0
  %1812 = vmatpush1.msra.mxu0 0.0
  %1813 = vmatprep.subr.mxu0 0.0
  %1814 = vmatpush1.msra.mxu0 0.0
  %1815 = vmatprep.subr.mxu0 0.0
  %1816 = vmatpush1.msra.mxu0 0.0
  %1817 = vmatprep.subr.mxu0 0.0
  %1818 = vmatpush1.msra.mxu0 0.0
  %1819 = vmatprep.subr.mxu0 0.0
  %1820 = vmatpush1.msra.mxu0 0.0
  %1821 = vmatprep.subr.mxu0 0.0
  %1822 = vmatpush1.msra.mxu0 0.0
  %1823 = vmatprep.subr.mxu0 0.0
  %1824 = vmatpush1.msra.mxu0 0.0
  %1825 = vmatprep.subr.mxu0 0.0
  %1826 = vmatpush1.msra.mxu0 0.0
  %1827 = vmatprep.subr.mxu0 0.0
  %1828 = vmatpush1.msra.mxu0 0.0
  %1829 = vmatprep.subr.mxu0 0.0
  %1830 = vmatpush1.msra.mxu0 %v1799
  %1831 = vmatprep.subr.mxu0 0.0
  %1832 = vmatpush1.msra.mxu0 %v1712
  %1833 = vmatprep.subr.mxu0 0.0
  %1834 = vmatpush2.msra.mxu0 0.0
  %1835 = vmatprep.subr.mxu0 0.0
  %1836 = vmatpush2.msra.mxu0 0.0
  %1837 = vmatprep.subr.mxu0 0.0
  %1838 = vmatpush2.msra.mxu0 0.0
  %1839 = vmatprep.subr.mxu0 0.0
  %1840 = vmatpush2.msra.mxu0 0.0
  %1841 = vmatprep.subr.mxu0 0.0
  %1842 = vmatpush2.msra.mxu0 0.0
  %1843 = vmatprep.subr.mxu0 0.0
  %1844 = vmatpush2.msra.mxu0 0.0
  %1845 = vmatprep.subr.mxu0 0.0
  %1846 = vmatpush2.msra.mxu0 0.0
  %1847 = vmatprep.subr.mxu0 0.0
  %1848 = vmatpush2.msra.mxu0 0.0
  %1849 = vmatprep.subr.mxu0 0.0
  %1850 = vmatpush2.msra.mxu0 0.0
  %1851 = vmatprep.subr.mxu0 0.0
  %1852 = vmatpush2.msra.mxu0 0.0
  %1853 = vmatprep.subr.mxu0 0.0
  %1854 = vmatpush2.msra.mxu0 0.0
  %1855 = vmatprep.subr.mxu0 0.0
  %1856 = vmatpush2.msra.mxu0 0.0
  %1857 = vmatprep.subr.mxu0 0.0
  %1858 = vmatpush2.msra.mxu0 0.0
  %1859 = vmatprep.subr.mxu0 0.0
  %1860 = vmatpush2.msra.mxu0 0.0
  %1861 = vmatprep.subr.mxu0 0.0
  %1862 = vmatpush2.msra.mxu0 0.0
  %1863 = vmatprep.subr.mxu0 0.0
  %1864 = vmatpush2.msra.mxu0 0.0
  %1865 = vmatprep.mubr.f32.mxu0 0.0
  %1866 = vmatmul.mubr.f32.gmra.mxu0 %v1723
  %v1867 = vpop.f32.mrf.mxu0
  %v1868 = vadd.f32 %v1719, %v1867
  %v1869 = vpop.f32.mrf.mxu0
  %1870 = vmatprep.mubr.f32.mxu0 0.0
  %1871 = vmatmul.mubr.f32.gmra.mxu0 %v1726
  %v1872 = vpop.f32.mrf.mxu0
  %v1873 = vadd.f32 %v1719, %v1872
  %v1874 = vpop.f32.mrf.mxu0
  %1875 = vmatprep.mubr.f32.mxu0 0.0
  %1876 = vmatmul.mubr.f32.gmra.mxu0 %v1729
  %v1877 = vpop.f32.mrf.mxu0
  %v1878 = vadd.f32 %v1719, %v1877
  %v1879 = vpop.f32.mrf.mxu0
  %1880 = vmatprep.mubr.f32.mxu0 0.0
  %1881 = vmatmul.mubr.f32.gmra.mxu0 %v1732
  %v1882 = vpop.f32.mrf.mxu0
  %v1883 = vadd.f32 %v1719, %v1882
  %v1884 = vpop.f32.mrf.mxu0
  %1885 = vmatprep.mubr.f32.mxu0 0.0
  %1886 = vmatmul.mubr.f32.gmra.mxu0 %v1735
  %v1887 = vpop.f32.mrf.mxu0
  %v1888 = vadd.f32 %v1719, %v1887
  %v1889 = vpop.f32.mrf.mxu0
  %1890 = vmatprep.mubr.f32.mxu0 0.0
  %1891 = vmatmul.mubr.f32.gmra.mxu0 %v1738
  %v1892 = vpop.f32.mrf.mxu0
  %v1893 = vadd.f32 %v1719, %v1892
  %v1894 = vpop.f32.mrf.mxu0
  %1895 = vmatprep.mubr.f32.mxu0 0.0
  %1896 = vmatmul.mubr.f32.gmra.mxu0 %v1741
  %v1897 = vpop.f32.mrf.mxu0
  %v1898 = vadd.f32 %v1719, %v1897
  %v1899 = vpop.f32.mrf.mxu0
  %1900 = vmatprep.mubr.f32.mxu0 0.0
  %1901 = vmatmul.mubr.f32.gmra.mxu0 %v1744
  %v1902 = vpop.f32.mrf.mxu0
  %v1903 = vadd.f32 %v1719, %v1902
  %v1904 = vpop.f32.mrf.mxu0
  %1905 = vmatprep.mubr.f32.mxu0 0.0
  %1906 = vmatmul.mubr.f32.gmra.mxu0 %v1747
  %v1907 = vpop.f32.mrf.mxu0
  %v1908 = vadd.f32 %v1719, %v1907
  %v1909 = vpop.f32.mrf.mxu0
  %1910 = vmatprep.mubr.f32.mxu0 0.0
  %1911 = vmatmul.mubr.f32.gmra.mxu0 %v1750
  %v1912 = vpop.f32.mrf.mxu0
  %v1913 = vadd.f32 %v1719, %v1912
  %v1914 = vpop.f32.mrf.mxu0
  %1915 = vmatprep.mubr.f32.mxu0 0.0
  %1916 = vmatmul.mubr.f32.gmra.mxu0 %v1753
  %v1917 = vpop.f32.mrf.mxu0
  %v1918 = vadd.f32 %v1719, %v1917
  %v1919 = vpop.f32.mrf.mxu0
  %1920 = vmatprep.mubr.f32.mxu0 0.0
  %1921 = vmatmul.mubr.f32.gmra.mxu0 %v1756
  %v1922 = vpop.f32.mrf.mxu0
  %v1923 = vadd.f32 %v1719, %v1922
  %v1924 = vpop.f32.mrf.mxu0
  %1925 = vmatprep.mubr.f32.mxu0 0.0
  %1926 = vmatmul.mubr.f32.gmra.mxu0 %v1759
  %v1927 = vpop.f32.mrf.mxu0
  %v1928 = vadd.f32 %v1719, %v1927
  %v1929 = vpop.f32.mrf.mxu0
  %1930 = vmatprep.mubr.f32.mxu0 0.0
  %1931 = vmatmul.mubr.f32.gmra.mxu0 %v1762
  %v1932 = vpop.f32.mrf.mxu0
  %v1933 = vadd.f32 %v1719, %v1932
  %v1934 = vpop.f32.mrf.mxu0
  %1935 = vmatprep.mubr.f32.mxu0 0.0
  %1936 = vmatmul.mubr.f32.gmra.mxu0 %v1765
  %v1937 = vpop.f32.mrf.mxu0
  %v1938 = vadd.f32 %v1719, %v1937
  %v1939 = vpop.f32.mrf.mxu0
  %1940 = vmatprep.mubr.f32.mxu0 0.0
  %1941 = vmatmul.mubr.f32.gmra.mxu0 %v1768
  %v1942 = vpop.f32.mrf.mxu0
  %v1943 = vadd.f32 %v1719, %v1942
  %v1944 = vpop.f32.mrf.mxu0
  %1945 = vmatprep.mubr.f32.mxu0 0.0
  %1946 = vmatmul.mubr.f32.gmra.mxu0 %v1771
  %v1947 = vpop.f32.mrf.mxu0
  %v1948 = vadd.f32 %v1719, %v1947
  %v1949 = vpop.f32.mrf.mxu0
  %1950 = vmatprep.mubr.f32.mxu0 0.0
  %1951 = vmatmul.mubr.f32.gmra.mxu0 %v1774
  %v1952 = vpop.f32.mrf.mxu0
  %v1953 = vadd.f32 %v1719, %v1952
  %v1954 = vpop.f32.mrf.mxu0
  %1955 = vmatprep.mubr.f32.mxu0 0.0
  %1956 = vmatmul.mubr.f32.gmra.mxu0 %v1777
  %v1957 = vpop.f32.mrf.mxu0
  %v1958 = vadd.f32 %v1719, %v1957
  %v1959 = vpop.f32.mrf.mxu0
  %1960 = vmatprep.mubr.f32.mxu0 0.0
  %1961 = vmatmul.mubr.f32.gmra.mxu0 %v1780
  %v1962 = vpop.f32.mrf.mxu0
  %v1963 = vadd.f32 %v1719, %v1962
  %v1964 = vpop.f32.mrf.mxu0
  %1965 = vmatprep.mubr.f32.mxu0 0.0
  %1966 = vmatmul.mubr.f32.gmra.mxu0 %v1783
  %v1967 = vpop.f32.mrf.mxu0
  %v1968 = vadd.f32 %v1719, %v1967
  %v1969 = vpop.f32.mrf.mxu0
  %1970 = vmatprep.mubr.f32.mxu0 0.0
  %1971 = vmatmul.mubr.f32.gmra.mxu0 %v1786
  %v1972 = vpop.f32.mrf.mxu0
  %v1973 = vadd.f32 %v1719, %v1972
  %v1974 = vpop.f32.mrf.mxu0
  %1975 = vmatprep.mubr.f32.mxu0 0.0
  %1976 = vmatmul.mubr.f32.gmra.mxu0 %v1789
  %v1977 = vpop.f32.mrf.mxu0
  %v1978 = vadd.f32 %v1719, %v1977
  %v1979 = vpop.f32.mrf.mxu0
  %1980 = vmatprep.mubr.f32.mxu0 0.0
  %1981 = vmatmul.mubr.f32.gmra.mxu0 %v1792
  %v1982 = vpop.f32.mrf.mxu0
  %v1983 = vadd.f32 %v1719, %v1982
  %v1984 = vpop.f32.mrf.mxu0
  %1985 = vmatprep.mubr.f32.mxu0 0.0
  %1986 = vmatmul.mubr.f32.gmra.mxu0 %v1795
  %v1987 = vpop.f32.mrf.mxu0
  %v1988 = vadd.f32 %v1719, %v1987
  %v1989 = vpop.f32.mrf.mxu0
  %1990 = vdwg.mxu0
  %v1991 = vxor.u32 %v1868, 2147483648
  %v1992 = vxor.u32 %v1873, 2147483648
  %v1993 = vxor.u32 %v1878, 2147483648
  %v1994 = vxor.u32 %v1883, 2147483648
  %v1995 = vxor.u32 %v1888, 2147483648
  %v1996 = vxor.u32 %v1893, 2147483648
  %v1997 = vxor.u32 %v1898, 2147483648
  %v1998 = vxor.u32 %v1903, 2147483648
  %v1999 = vxor.u32 %v1908, 2147483648
  %v2000 = vxor.u32 %v1913, 2147483648
  %v2001 = vxor.u32 %v1918, 2147483648
  %v2002 = vxor.u32 %v1923, 2147483648
  %v2003 = vxor.u32 %v1928, 2147483648
  %v2004 = vxor.u32 %v1933, 2147483648
  %v2005 = vxor.u32 %v1938, 2147483648
  %v2006 = vxor.u32 %v1943, 2147483648
  %v2007 = vxor.u32 %v1948, 2147483648
  %v2008 = vxor.u32 %v1953, 2147483648
  %v2009 = vxor.u32 %v1958, 2147483648
  %v2010 = vxor.u32 %v1963, 2147483648
  %v2011 = vxor.u32 %v1968, 2147483648
  %v2012 = vxor.u32 %v1973, 2147483648
  %v2013 = vxor.u32 %v1978, 2147483648
  %v2014 = vxor.u32 %v1983, 2147483648
  %v2015 = vxor.u32 %v1988, 2147483648
  %v2016 = vmul.f32 %v1991, 1.442695
  %v2017 = vpow.pop %v2016
  %v2018 = vmul.f32 %v1992, 1.442695
  %v2019 = vpow.pop %v2018
  %v2020 = vmul.f32 %v1993, 1.442695
  %v2021 = vpow.pop %v2020
  %v2022 = vmul.f32 %v1994, 1.442695
  %v2023 = vpow.pop %v2022
  %v2024 = vmul.f32 %v1995, 1.442695
  %v2025 = vpow.pop %v2024
  %v2026 = vmul.f32 %v1996, 1.442695
  %v2027 = vpow.pop %v2026
  %v2028 = vmul.f32 %v1997, 1.442695
  %v2029 = vpow.pop %v2028
  %v2030 = vmul.f32 %v1998, 1.442695
  %v2031 = vpow.pop %v2030
  %v2032 = vmul.f32 %v1999, 1.442695
  %v2033 = vpow.pop %v2032
  %v2034 = vmul.f32 %v2000, 1.442695
  %v2035 = vpow.pop %v2034
  %v2036 = vmul.f32 %v2001, 1.442695
  %v2037 = vpow.pop %v2036
  %v2038 = vmul.f32 %v2002, 1.442695
  %v2039 = vpow.pop %v2038
  %v2040 = vmul.f32 %v2003, 1.442695
  %v2041 = vpow.pop %v2040
  %v2042 = vmul.f32 %v2004, 1.442695
  %v2043 = vpow.pop %v2042
  %v2044 = vmul.f32 %v2005, 1.442695
  %v2045 = vpow.pop %v2044
  %v2046 = vmul.f32 %v2006, 1.442695
  %v2047 = vpow.pop %v2046
  %v2048 = vmul.f32 %v2007, 1.442695
  %v2049 = vpow.pop %v2048
  %v2050 = vmul.f32 %v2008, 1.442695
  %v2051 = vpow.pop %v2050
  %v2052 = vmul.f32 %v2009, 1.442695
  %v2053 = vpow.pop %v2052
  %v2054 = vmul.f32 %v2010, 1.442695
  %v2055 = vpow.pop %v2054
  %v2056 = vmul.f32 %v2011, 1.442695
  %v2057 = vpow.pop %v2056
  %v2058 = vmul.f32 %v2012, 1.442695
  %v2059 = vpow.pop %v2058
  %v2060 = vmul.f32 %v2013, 1.442695
  %v2061 = vpow.pop %v2060
  %v2062 = vmul.f32 %v2014, 1.442695
  %v2063 = vpow.pop %v2062
  %v2064 = vmul.f32 %v2015, 1.442695
  %v2065 = vpow.pop %v2064
  %v2066 = vadd.f32 %v2017, 1.0
  %v2067 = vadd.f32 %v2019, 1.0
  %v2068 = vadd.f32 %v2021, 1.0
  %v2069 = vadd.f32 %v2023, 1.0
  %v2070 = vadd.f32 %v2025, 1.0
  %v2071 = vadd.f32 %v2027, 1.0
  %v2072 = vadd.f32 %v2029, 1.0
  %v2073 = vadd.f32 %v2031, 1.0
  %v2074 = vadd.f32 %v2033, 1.0
  %v2075 = vadd.f32 %v2035, 1.0
  %v2076 = vadd.f32 %v2037, 1.0
  %v2077 = vadd.f32 %v2039, 1.0
  %v2078 = vadd.f32 %v2041, 1.0
  %v2079 = vadd.f32 %v2043, 1.0
  %v2080 = vadd.f32 %v2045, 1.0
  %v2081 = vadd.f32 %v2047, 1.0
  %v2082 = vadd.f32 %v2049, 1.0
  %v2083 = vadd.f32 %v2051, 1.0
  %v2084 = vadd.f32 %v2053, 1.0
  %v2085 = vadd.f32 %v2055, 1.0
  %v2086 = vadd.f32 %v2057, 1.0
  %v2087 = vadd.f32 %v2059, 1.0
  %v2088 = vadd.f32 %v2061, 1.0
  %v2089 = vadd.f32 %v2063, 1.0
  %v2090 = vadd.f32 %v2065, 1.0
  %v2091 = vrcp.pop %v2066
  %v2092 = vmul.f32 1.0, %v2091
  %v2093 = vrcp.pop %v2067
  %v2094 = vmul.f32 1.0, %v2093
  %v2095 = vrcp.pop %v2068
  %v2096 = vmul.f32 1.0, %v2095
  %v2097 = vrcp.pop %v2069
  %v2098 = vmul.f32 1.0, %v2097
  %v2099 = vrcp.pop %v2070
  %v2100 = vmul.f32 1.0, %v2099
  %v2101 = vrcp.pop %v2071
  %v2102 = vmul.f32 1.0, %v2101
  %v2103 = vrcp.pop %v2072
  %v2104 = vmul.f32 1.0, %v2103
  %v2105 = vrcp.pop %v2073
  %v2106 = vmul.f32 1.0, %v2105
  %v2107 = vrcp.pop %v2074
  %v2108 = vmul.f32 1.0, %v2107
  %v2109 = vrcp.pop %v2075
  %v2110 = vmul.f32 1.0, %v2109
  %v2111 = vrcp.pop %v2076
  %v2112 = vmul.f32 1.0, %v2111
  %v2113 = vrcp.pop %v2077
  %v2114 = vmul.f32 1.0, %v2113
  %v2115 = vrcp.pop %v2078
  %v2116 = vmul.f32 1.0, %v2115
  %v2117 = vrcp.pop %v2079
  %v2118 = vmul.f32 1.0, %v2117
  %v2119 = vrcp.pop %v2080
  %v2120 = vmul.f32 1.0, %v2119
  %v2121 = vrcp.pop %v2081
  %v2122 = vmul.f32 1.0, %v2121
  %v2123 = vrcp.pop %v2082
  %v2124 = vmul.f32 1.0, %v2123
  %v2125 = vrcp.pop %v2083
  %v2126 = vmul.f32 1.0, %v2125
  %v2127 = vrcp.pop %v2084
  %v2128 = vmul.f32 1.0, %v2127
  %v2129 = vrcp.pop %v2085
  %v2130 = vmul.f32 1.0, %v2129
  %v2131 = vrcp.pop %v2086
  %v2132 = vmul.f32 1.0, %v2131
  %v2133 = vrcp.pop %v2087
  %v2134 = vmul.f32 1.0, %v2133
  %v2135 = vrcp.pop %v2088
  %v2136 = vmul.f32 1.0, %v2135
  %v2137 = vrcp.pop %v2089
  %v2138 = vmul.f32 1.0, %v2137
  %v2139 = vrcp.pop %v2090
  %v2140 = vmul.f32 1.0, %v2139
  %vm2141 = vcmask 15360
  %2142 = vst.msk [vmem:[%s8] sm:$0xff] %vm2141, %v2092
  %2143 = vst.msk [vmem:[%s8 + $0x8] sm:$0xff] %vm2141, %v2094
  %2144 = vst.msk [vmem:[%s8 + $0x10] sm:$0xff] %vm2141, %v2096
  %2145 = vst.msk [vmem:[%s8 + $0x18] sm:$0xff] %vm2141, %v2098
  %2146 = vst.msk [vmem:[%s8 + $0x20] sm:$0xff] %vm2141, %v2100
  %2147 = vst.msk [vmem:[%s8 + $0x28] sm:$0xff] %vm2141, %v2102
  %2148 = vst.msk [vmem:[%s8 + $0x30] sm:$0xff] %vm2141, %v2104
  %2149 = vst.msk [vmem:[%s8 + $0x38] sm:$0xff] %vm2141, %v2106
  %2150 = vst.msk [vmem:[%s8 + $0x40] sm:$0xff] %vm2141, %v2108
  %2151 = vst.msk [vmem:[%s8 + $0x48] sm:$0xff] %vm2141, %v2110
  %2152 = vst.msk [vmem:[%s8 + $0x50] sm:$0xff] %vm2141, %v2112
  %2153 = vst.msk [vmem:[%s8 + $0x58] sm:$0xff] %vm2141, %v2114
  %2154 = vst.msk [vmem:[%s8 + $0x60] sm:$0xff] %vm2141, %v2116
  %2155 = vst.msk [vmem:[%s8 + $0x68] sm:$0xff] %vm2141, %v2118
  %2156 = vst.msk [vmem:[%s8 + $0x70] sm:$0xff] %vm2141, %v2120
  %2157 = vst.msk [vmem:[%s8 + $0x78] sm:$0xff] %vm2141, %v2122
  %2158 = vst.msk [vmem:[%s8 + $0x80] sm:$0xff] %vm2141, %v2124
  %2159 = vst.msk [vmem:[%s8 + $0x88] sm:$0xff] %vm2141, %v2126
  %2160 = vst.msk [vmem:[%s8 + $0x90] sm:$0xff] %vm2141, %v2128
  %2161 = vst.msk [vmem:[%s8 + $0x98] sm:$0xff] %vm2141, %v2130
  %2162 = vst.msk [vmem:[%s8 + $0xa0] sm:$0xff] %vm2141, %v2132
  %2163 = vst.msk [vmem:[%s8 + $0xa8] sm:$0xff] %vm2141, %v2134
  %2164 = vst.msk [vmem:[%s8 + $0xb0] sm:$0xff] %vm2141, %v2136
  %2165 = vst.msk [vmem:[%s8 + $0xb8] sm:$0xff] %vm2141, %v2138
  %2166 = vst.msk [vmem:[%s8 + $0xc0] sm:$0xff] %vm2141, %v2140
  // Predicated region
  $region34: #{deep_prediction_forward.1} parent=0 // pred_check
    _
  $region35: #{deep_prediction_forward.1} parent=0 // pred_check_branch
    %2168 = sbr.rel (0) target = $region37
  $region36: #{deep_prediction_forward.1} parent=0 // pred_region
    _
  $region37: #{deep_prediction_forward.1} parent=0 // pred_fallthru
    _
  // Predicated region
  $region38: #{deep_prediction_forward.1} parent=0 // pred_check
    _
  $region39: #{deep_prediction_forward.1} parent=0 // pred_check_branch
    %2170 = sbr.rel (0) target = $region41
  $region40: #{deep_prediction_forward.1} parent=0 // pred_region
    _
  $region41: #{deep_prediction_forward.1} parent=0 // pred_fallthru
    _

</llo_original>
